<compile_context>
chip_gen: v7x
topology: tpu7x:2x2x1
jax: 0.10.0
libtpu: 0.0.40
codegen_flags: <defaults>
</compile_context>

<pallas_src>
import functools

import jax
import jax.numpy as jnp
from jax.experimental import pallas as pl
from jax.experimental.pallas import tpu as pltpu

LN_EPS = 1e-5
BN_EPS = 1e-5
_VMEM_LIMIT = 48 * 1024 * 1024  # explicit scoped-VMEM budget, safe on v5e/v6e/v7x


def calc_same_padding(kernel_size):
    pad = kernel_size // 2
    return (pad, pad - (kernel_size + 1) % 2)


def _sigmoid(x):
    return 1.0 / (1.0 + jnp.exp(-x))


def _layer_norm(x, g, b, eps=LN_EPS):
    mu = jnp.mean(x, axis=-1, keepdims=True)
    var = jnp.mean(jnp.square(x - mu), axis=-1, keepdims=True)
    return (x - mu) * jax.lax.rsqrt(var + eps) * g + b


# ---------------------------------------------------------------------------
# Kernel 1: macaron FeedForward  (Scale(0.5, PreNorm(FFN)) + residual)
# ---------------------------------------------------------------------------
def _ffn_kernel(x_ref, g_ref, b_ref, w1_ref, b1_ref, w2_ref, b2_ref,
                pg_ref, pb_ref, o_ref, *, apply_post_ln):
    x = x_ref[...].astype(jnp.float32)
    xn = _layer_norm(x, g_ref[...], b_ref[...])
    h = jnp.dot(xn.astype(jnp.bfloat16), w1_ref[...],
                preferred_element_type=jnp.float32) + b1_ref[...]
    h = h * _sigmoid(h)                                   # Swish
    y = jnp.dot(h.astype(jnp.bfloat16), w2_ref[...],
                preferred_element_type=jnp.float32) + b2_ref[...]
    y = x + 0.5 * y                                       # Scale(0.5) + residual
    if apply_post_ln:                                     # fused final post_norm (ff2 only)
        y = _layer_norm(y, pg_ref[...], pb_ref[...])
    o_ref[...] = y.astype(o_ref.dtype)


def _ffn_block(x, p, post_g, post_b, apply_post_ln, block_rows):
    B, S, D = x.shape
    M = B * S
    dff = p['w1'].shape[1]
    tm = min(block_rows, M)
    x2 = x.reshape(M, D)
    mp = pl.cdiv(M, tm) * tm
    if mp != M:
        x2 = jnp.pad(x2, ((0, mp - M), (0, 0)))
    out = pl.pallas_call(
        functools.partial(_ffn_kernel, apply_post_ln=apply_post_ln),
        out_shape=jax.ShapeDtypeStruct((mp, D), x.dtype),
        grid=(mp // tm,),
        in_specs=[
            pl.BlockSpec((tm, D), lambda i: (i, 0)),      # x rows (streamed)
            pl.BlockSpec((1, D), lambda i: (0, 0)),       # LN gamma (resident)
            pl.BlockSpec((1, D), lambda i: (0, 0)),       # LN beta
            pl.BlockSpec((D, dff), lambda i: (0, 0)),     # W1 (bf16, resident)
            pl.BlockSpec((1, dff), lambda i: (0, 0)),     # b1
            pl.BlockSpec((dff, D), lambda i: (0, 0)),     # W2 (bf16, resident)
            pl.BlockSpec((1, D), lambda i: (0, 0)),       # b2
            pl.BlockSpec((1, D), lambda i: (0, 0)),       # post-LN gamma
            pl.BlockSpec((1, D), lambda i: (0, 0)),       # post-LN beta
        ],
        out_specs=pl.BlockSpec((tm, D), lambda i: (i, 0)),
        compiler_params=pltpu.CompilerParams(
            dimension_semantics=("parallel",),
            vmem_limit_bytes=_VMEM_LIMIT),
    )(x2, p['ln_g'], p['ln_b'],
      p['w1'].astype(jnp.bfloat16), p['b1'],
      p['w2'].astype(jnp.bfloat16), p['b2'],
      post_g, post_b)
    return out[:M].reshape(B, S, D)


# ---------------------------------------------------------------------------
# Kernel 2: attention PreNorm + q/k/v projections
# ---------------------------------------------------------------------------
def _qkv_kernel(x_ref, g_ref, b_ref, wq_ref, wk_ref, wv_ref,
                q_ref, k_ref, v_ref):
    x = x_ref[...].astype(jnp.float32)
    xn = _layer_norm(x, g_ref[...], b_ref[...]).astype(jnp.bfloat16)
    q_ref[...] = jnp.dot(xn, wq_ref[...],
                         preferred_element_type=jnp.float32).astype(q_ref.dtype)
    k_ref[...] = jnp.dot(xn, wk_ref[...],
                         preferred_element_type=jnp.float32).astype(k_ref.dtype)
    v_ref[...] = jnp.dot(xn, wv_ref[...],
                         preferred_element_type=jnp.float32).astype(v_ref.dtype)


def _qkv_proj(x, a, block_rows):
    B, S, D = x.shape
    inner = a['heads'] * a['dim_head']
    M = B * S
    tm = min(block_rows, M)
    x2 = x.reshape(M, D)
    mp = pl.cdiv(M, tm) * tm
    if mp != M:
        x2 = jnp.pad(x2, ((0, mp - M), (0, 0)))
    q2, k2, v2 = pl.pallas_call(
        _qkv_kernel,
        out_shape=tuple(jax.ShapeDtypeStruct((mp, inner), jnp.float32)
                        for _ in range(3)),
        grid=(mp // tm,),
        in_specs=[
            pl.BlockSpec((tm, D), lambda i: (i, 0)),
            pl.BlockSpec((1, D), lambda i: (0, 0)),
            pl.BlockSpec((1, D), lambda i: (0, 0)),
            pl.BlockSpec((D, inner), lambda i: (0, 0)),
            pl.BlockSpec((D, inner), lambda i: (0, 0)),
            pl.BlockSpec((D, inner), lambda i: (0, 0)),
        ],
        out_specs=tuple(pl.BlockSpec((tm, inner), lambda i: (i, 0))
                        for _ in range(3)),
        compiler_params=pltpu.CompilerParams(
            dimension_semantics=("parallel",),
            vmem_limit_bytes=_VMEM_LIMIT),
    )(x2, a['ln_g'], a['ln_b'],
      a['wq'].astype(jnp.bfloat16), a['wk'].astype(jnp.bfloat16),
      a['wv'].astype(jnp.bfloat16))
    return q2[:M], k2[:M], v2[:M]


# ---------------------------------------------------------------------------
# Kernel 3: attention core + per-head output projection (+ bias + residual)
# ---------------------------------------------------------------------------
def _attn_kernel(q_ref, k_ref, v_ref, pos_ref, wo_ref, bo_ref, xres_ref,
                 o_ref, acc_ref, *, scale):
    h = pl.program_id(1)

    @pl.when(h == 0)
    def _init():
        acc_ref[...] = jnp.zeros_like(acc_ref)

    q = q_ref[0].astype(jnp.bfloat16)                 # (S, dh)
    k = k_ref[0].astype(jnp.bfloat16)
    v = v_ref[0].astype(jnp.bfloat16)
    dots = jnp.einsum('id,jd->ij', q, k,
                      preferred_element_type=jnp.float32) * scale
    dots = dots + pos_ref[0]                          # relative positional bias
    m = jnp.max(dots, axis=-1, keepdims=True)
    p = jnp.exp(dots - m)
    attn = p / jnp.sum(p, axis=-1, keepdims=True)
    out_h = jnp.dot(attn.astype(jnp.bfloat16), v,
                    preferred_element_type=jnp.float32)            # (S, dh)
    acc_ref[...] += jnp.dot(out_h.astype(jnp.bfloat16), wo_ref[0],
                            preferred_element_type=jnp.float32)    # (S, D)

    @pl.when(h == pl.num_programs(1) - 1)
    def _finalize():
        o_ref[0] = (acc_ref[...] + bo_ref[...]
                    + xres_ref[0].astype(jnp.float32)).astype(o_ref.dtype)


def _attention_block(x, a, block_rows):
    B, S, D = x.shape
    heads, dh = a['heads'], a['dim_head']
    scale = dh ** -0.5
    q2, k2, v2 = _qkv_proj(x, a, block_rows)

    def split(t):  # (B*S, heads*dh) -> (B*heads, S, dh)
        return t.reshape(B, S, heads, dh).transpose(0, 2, 1, 3).reshape(B * heads, S, dh)

    qh, kh, vh = split(q2), split(k2), split(v2)

    # Relative positional embedding gather + bias einsum kept in XLA.
    # TODO(synk): fold the rel-pos gather/bias into the attention kernel via a DMA gather.
    seq = jnp.arange(S)
    dist = jnp.clip(seq[:, None] - seq[None, :],
                    -a['max_pos_emb'], a['max_pos_emb']) + a['max_pos_emb']
    rel = jnp.take(a['rel_emb'], dist, axis=0)                         # (S, S, dh)
    pos = jnp.einsum('xid,ijd->xij', qh.astype(jnp.bfloat16),
                     rel.astype(jnp.bfloat16),
                     preferred_element_type=jnp.float32) * scale       # (B*heads, S, S)

    wo = a['wo'].reshape(heads, dh, D).astype(jnp.bfloat16)
    bh_map = lambda b, h: (b * heads + h, 0, 0)

    out = pl.pallas_call(
        functools.partial(_attn_kernel, scale=scale),
        out_shape=jax.ShapeDtypeStruct((B, S, D), x.dtype),
        grid=(B, heads),
        in_specs=[
            pl.BlockSpec((1, S, dh), bh_map),                   # q
            pl.BlockSpec((1, S, dh), bh_map),                   # k
            pl.BlockSpec((1, S, dh), bh_map),                   # v
            pl.BlockSpec((1, S, S), bh_map),                    # rel-pos bias
            pl.BlockSpec((1, dh, D), lambda b, h: (h, 0, 0)),   # Wo (per head)
            pl.BlockSpec((1, D), lambda b, h: (0, 0)),          # bo
            pl.BlockSpec((1, S, D), lambda b, h: (b, 0, 0)),    # residual x
        ],
        out_specs=pl.BlockSpec((1, S, D), lambda b, h: (b, 0, 0)),  # accumulated over h
        scratch_shapes=[pltpu.VMEM((S, D), jnp.float32)],
        compiler_params=pltpu.CompilerParams(
            dimension_semantics=("parallel", "arbitrary"),
            vmem_limit_bytes=_VMEM_LIMIT),
    )(qh, kh, vh, pos, wo, a['bo'], x)
    return out


# ---------------------------------------------------------------------------
# Kernel 4: ConformerConvModule (+ residual)
# ---------------------------------------------------------------------------
def _conv_kernel(x_ref, g_ref, b_ref, w1_ref, b1_ref, wdw_ref, bdw_ref,
                 bng_ref, bnb_ref, bnm_ref, bnv_ref, w2_ref, b2_ref,
                 o_ref, pad_ref, *, kernel_size, pad_left, seq_len):
    x = x_ref[0].astype(jnp.float32)                       # (S, D)
    xn = _layer_norm(x, g_ref[...], b_ref[...])
    h = jnp.dot(xn.astype(jnp.bfloat16), w1_ref[...],
                preferred_element_type=jnp.float32) + b1_ref[...]   # (S, 2C)
    c = wdw_ref.shape[1]
    glu = h[:, :c] * _sigmoid(h[:, c:])                    # GLU along channels

    # Depthwise conv along time: zero-padded VMEM scratch + shifted tap reads.
    pad_ref[...] = jnp.zeros_like(pad_ref)
    pad_ref[pl.ds(pad_left, seq_len), :] = glu
    y = jnp.zeros((seq_len, c), jnp.float32)
    for kk in range(kernel_size):                          # static 31-tap unroll
        y = y + pad_ref[pl.ds(kk, seq_len), :] * wdw_ref[pl.ds(kk, 1), :]
    y = y + bdw_ref[...]

    # TODO(synk): training-mode BatchNorm (batch statistics) not implemented;
    # eval-mode running statistics are used.
    y = (y - bnm_ref[...]) * jax.lax.rsqrt(bnv_ref[...] + BN_EPS) * bng_ref[...] + bnb_ref[...]
    y = y * _sigmoid(y)                                    # Swish
    out = jnp.dot(y.astype(jnp.bfloat16), w2_ref[...],
                  preferred_element_type=jnp.float32) + b2_ref[...]
    o_ref[0] = (x + out).astype(o_ref.dtype)


def _conv_block(x, c):
    B, S, D = x.shape
    K, C = c['w_dw'].shape
    pad_l, pad_r = c['pad']
    out = pl.pallas_call(
        functools.partial(_conv_kernel, kernel_size=K, pad_left=pad_l, seq_len=S),
        out_shape=jax.ShapeDtypeStruct((B, S, D), x.dtype),
        grid=(B,),
        in_specs=[
            pl.BlockSpec((1, S, D), lambda b: (b, 0, 0)),   # x
            pl.BlockSpec((1, D), lambda b: (0, 0)),         # LN gamma
            pl.BlockSpec((1, D), lambda b: (0, 0)),         # LN beta
            pl.BlockSpec((D, 2 * C), lambda b: (0, 0)),     # pointwise conv 1 (bf16)
            pl.BlockSpec((1, 2 * C), lambda b: (0, 0)),
            pl.BlockSpec((K, C), lambda b: (0, 0)),         # depthwise taps
            pl.BlockSpec((1, C), lambda b: (0, 0)),
            pl.BlockSpec((1, C), lambda b: (0, 0)),         # BN gamma
            pl.BlockSpec((1, C), lambda b: (0, 0)),         # BN beta
            pl.BlockSpec((1, C), lambda b: (0, 0)),         # BN running mean
            pl.BlockSpec((1, C), lambda b: (0, 0)),         # BN running var
            pl.BlockSpec((C, D), lambda b: (0, 0)),         # pointwise conv 2 (bf16)
            pl.BlockSpec((1, D), lambda b: (0, 0)),
        ],
        out_specs=pl.BlockSpec((1, S, D), lambda b: (b, 0, 0)),
        scratch_shapes=[pltpu.VMEM((S + K - 1, C), jnp.float32)],
        compiler_params=pltpu.CompilerParams(
            dimension_semantics=("parallel",),
            vmem_limit_bytes=_VMEM_LIMIT),
    )(x, c['ln_g'], c['ln_b'],
      c['w_pw1'].astype(jnp.bfloat16), c['b_pw1'],
      c['w_dw'], c['b_dw'],
      c['bn_g'], c['bn_b'], c['bn_mean'], c['bn_var'],
      c['w_pw2'].astype(jnp.bfloat16), c['b_pw2'])
    return out


# ---------------------------------------------------------------------------
# Full ConformerBlock forward
# ---------------------------------------------------------------------------
def conformer_block_forward(x, params, block_rows=256):
    B, S, D = x.shape
    ones = jnp.ones((1, D), jnp.float32)
    zeros = jnp.zeros((1, D), jnp.float32)
    # 1) x = 0.5 * FFN(LN(x)) + x
    x = _ffn_block(x, params['ff1'], ones, zeros,
                   apply_post_ln=False, block_rows=block_rows)
    # 2) x = Attention(LN(x)) + x
    x = _attention_block(x, params['attn'], block_rows)
    # 3) x = ConvModule(x) + x
    x = _conv_block(x, params['conv'])
    # 4) x = post_LN(0.5 * FFN(LN(x)) + x)   (post-norm fused into the FFN kernel)
    x = _ffn_block(x, params['ff2'], params['post_ln_g'], params['post_ln_b'],
                   apply_post_ln=True, block_rows=block_rows)
    return x


# ---------------------------------------------------------------------------
# Pure-JAX reference (same math / mixed precision policy)
# ---------------------------------------------------------------------------
def conformer_block_ref(x, p):
    def mm(a, w):
        return jnp.dot(a.astype(jnp.bfloat16), w.astype(jnp.bfloat16),
                       preferred_element_type=jnp.float32)

    def ffn(v, q):
        h = mm(_layer_norm(v, q['ln_g'], q['ln_b']), q['w1']) + q['b1']
        h = h * _sigmoid(h)
        return mm(h, q['w2']) + q['b2']

    B, S, D = x.shape
    x = x + 0.5 * ffn(x, p['ff1'])

    a = p['attn']
    heads, dh, mpe = a['heads'], a['dim_head'], a['max_pos_emb']
    xn = _layer_norm(x, a['ln_g'], a['ln_b'])
    q, k, v = mm(xn, a['wq']), mm(xn, a['wk']), mm(xn, a['wv'])

    def split(t):
        return t.reshape(B, S, heads, dh).transpose(0, 2, 1, 3)

    qh, kh, vh = split(q), split(k), split(v)
    scale = dh ** -0.5
    dots = jnp.einsum('bhid,bhjd->bhij', qh.astype(jnp.bfloat16),
                      kh.astype(jnp.bfloat16),
                      preferred_element_type=jnp.float32) * scale
    seq = jnp.arange(S)
    dist = jnp.clip(seq[:, None] - seq[None, :], -mpe, mpe) + mpe
    rel = jnp.take(a['rel_emb'], dist, axis=0)
    pos = jnp.einsum('bhid,ijd->bhij', qh.astype(jnp.bfloat16),
                     rel.astype(jnp.bfloat16),
                     preferred_element_type=jnp.float32) * scale
    dots = dots + pos
    m = jnp.max(dots, axis=-1, keepdims=True)
    e = jnp.exp(dots - m)
    attn = e / jnp.sum(e, axis=-1, keepdims=True)
    out = jnp.einsum('bhij,bhjd->bhid', attn.astype(jnp.bfloat16),
                     vh.astype(jnp.bfloat16),
                     preferred_element_type=jnp.float32)
    out = out.transpose(0, 2, 1, 3).reshape(B, S, heads * dh)
    x = x + mm(out, a['wo']) + a['bo']

    c = p['conv']
    xn = _layer_norm(x, c['ln_g'], c['ln_b'])
    h = mm(xn, c['w_pw1']) + c['b_pw1']
    K, C = c['w_dw'].shape
    glu = h[..., :C] * _sigmoid(h[..., C:])
    pad_l, pad_r = c['pad']
    hp = jnp.pad(glu, ((0, 0), (pad_l, pad_r), (0, 0)))
    y = jnp.zeros_like(glu)
    for kk in range(K):
        y = y + hp[:, kk:kk + S, :] * c['w_dw'][kk]
    y = y + c['b_dw']
    y = (y - c['bn_mean']) * jax.lax.rsqrt(c['bn_var'] + BN_EPS) * c['bn_g'] + c['bn_b']
    y = y * _sigmoid(y)
    x = x + mm(y, c['w_pw2']) + c['b_pw2']

    x = x + 0.5 * ffn(x, p['ff2'])
    x = _layer_norm(x, p['post_ln_g'], p['post_ln_b'])
    return x


# ---------------------------------------------------------------------------
# Deterministic parameter init
# ---------------------------------------------------------------------------
def init_params(key, dim, heads, dim_head, ff_mult, conv_exp, conv_kernel, max_pos_emb):
    inner = heads * dim_head
    dff = dim * ff_mult
    cin = dim * conv_exp
    keys = iter(jax.random.split(key, 48))

    def nrm(shape, s):
        return jax.random.normal(next(keys), shape, jnp.float32) * s

    def ln_pair(d):
        return 1.0 + nrm((1, d), 0.1), nrm((1, d), 0.05)

    def ffn_params():
        g, b = ln_pair(dim)
        return dict(ln_g=g, ln_b=b,
                    w1=nrm((dim, dff), 0.05), b1=nrm((1, dff), 0.02),
                    w2=nrm((dff, dim), 0.05), b2=nrm((1, dim), 0.02))

    ag, ab = ln_pair(dim)
    attn = dict(ln_g=ag, ln_b=ab,
                wq=nrm((dim, inner), 0.05),
                wk=nrm((dim, inner), 0.05),
                wv=nrm((dim, inner), 0.05),
                wo=nrm((inner, dim), 0.05),
                bo=nrm((1, dim), 0.02),
                rel_emb=nrm((2 * max_pos_emb + 1, dim_head), 0.05),
                heads=heads, dim_head=dim_head, max_pos_emb=max_pos_emb)

    cg, cb = ln_pair(dim)
    bng, bnb = ln_pair(cin)
    conv = dict(ln_g=cg, ln_b=cb,
                w_pw1=nrm((dim, 2 * cin), 0.05), b_pw1=nrm((1, 2 * cin), 0.02),
                w_dw=nrm((conv_kernel, cin), 0.05), b_dw=nrm((1, cin), 0.02),
                bn_g=bng, bn_b=bnb,
                bn_mean=nrm((1, cin), 0.05),
                bn_var=1.0 + jnp.abs(nrm((1, cin), 0.1)),
                w_pw2=nrm((cin, dim), 0.05), b_pw2=nrm((1, dim), 0.02),
                pad=calc_same_padding(conv_kernel))
    pg, pb = ln_pair(dim)
    return dict(ff1=ffn_params(), ff2=ffn_params(), attn=attn, conv=conv,
                post_ln_g=pg, post_ln_b=pb)


if __name__ == "__main__":
    key = jax.random.PRNGKey(0)
    k_x, k_p = jax.random.split(key)

    # Small but lane-dense shapes (dim multiple of 128 keeps stores unmasked).
    B, S, D = 2, 128, 128
    heads, dim_head = 2, 64
    ff_mult, conv_exp, conv_kernel, max_pos_emb = 4, 2, 31, 512

    x = jax.random.normal(k_x, (B, S, D), dtype=jnp.float32)
    params = init_params(k_p, D, heads, dim_head, ff_mult, conv_exp,
                         conv_kernel, max_pos_emb)

    out = conformer_block_forward(x, params, block_rows=128)
    out = jax.block_until_ready(out)

    ref = conformer_block_ref(x, params)
    assert out.shape == (B, S, D)
    assert jnp.allclose(out, ref, atol=1e-2, rtol=1e-2), \
        f"max abs diff = {float(jnp.max(jnp.abs(out - ref)))}"

    print("KERNEL_OK")
</pallas_src>

<mosaic_0001>
module attributes {stable_mosaic.version = 11 : i64} {
  func.func @_ffn_kernel(%arg0: i32, %arg1: memref<128x128xf32, #tpu.memory_space<vmem>>, %arg2: memref<1x128xf32, #tpu.memory_space<vmem>>, %arg3: memref<1x128xf32, #tpu.memory_space<vmem>>, %arg4: memref<128x512xbf16, #tpu.memory_space<vmem>>, %arg5: memref<1x512xf32, #tpu.memory_space<vmem>>, %arg6: memref<512x128xbf16, #tpu.memory_space<vmem>>, %arg7: memref<1x128xf32, #tpu.memory_space<vmem>>, %arg8: memref<1x128xf32, #tpu.memory_space<vmem>>, %arg9: memref<1x128xf32, #tpu.memory_space<vmem>>, %arg10: memref<128x128xf32, #tpu.memory_space<vmem>>) attributes {dimension_semantics = [#tpu.dimension_semantics<parallel>], iteration_bounds = array<i64: 2>, scalar_prefetch = 0 : i64, scratch_operands = 0 : i64, tpu.core_type = #tpu.core_type<tc>, window_params = [{transform_indices = @transform_0, window_bounds = array<i64: 128, 128>}, {pipeline_mode = #tpu.pipeline_mode<synchronous>, transform_indices = @transform_1, window_bounds = array<i64: 1, 128>}, {pipeline_mode = #tpu.pipeline_mode<synchronous>, transform_indices = @transform_2, window_bounds = array<i64: 1, 128>}, {pipeline_mode = #tpu.pipeline_mode<synchronous>, transform_indices = @transform_3, window_bounds = array<i64: 128, 512>}, {pipeline_mode = #tpu.pipeline_mode<synchronous>, transform_indices = @transform_4, window_bounds = array<i64: 1, 512>}, {pipeline_mode = #tpu.pipeline_mode<synchronous>, transform_indices = @transform_5, window_bounds = array<i64: 512, 128>}, {pipeline_mode = #tpu.pipeline_mode<synchronous>, transform_indices = @transform_6, window_bounds = array<i64: 1, 128>}, {pipeline_mode = #tpu.pipeline_mode<synchronous>, transform_indices = @transform_7, window_bounds = array<i64: 1, 128>}, {pipeline_mode = #tpu.pipeline_mode<synchronous>, transform_indices = @transform_8, window_bounds = array<i64: 1, 128>}, {transform_indices = @transform_9, window_bounds = array<i64: 128, 128>}]} {
    %c0 = arith.constant 0 : index
    %c0_0 = arith.constant 0 : index
    %0 = vector.load %arg1[%c0, %c0_0] : memref<128x128xf32, #tpu.memory_space<vmem>>, vector<128x128xf32>
    %c0_1 = arith.constant 0 : index
    %c0_2 = arith.constant 0 : index
    %1 = vector.load %arg2[%c0_1, %c0_2] : memref<1x128xf32, #tpu.memory_space<vmem>>, vector<1x128xf32>
    %c0_3 = arith.constant 0 : index
    %c0_4 = arith.constant 0 : index
    %2 = vector.load %arg3[%c0_3, %c0_4] : memref<1x128xf32, #tpu.memory_space<vmem>>, vector<1x128xf32>
    %cst = arith.constant dense<0.000000e+00> : vector<128xf32>
    %3 = vector.multi_reduction <add>, %0, %cst [1] : vector<128x128xf32> to vector<128xf32>
    %4 = vector.shape_cast %3 : vector<128xf32> to vector<128x1xf32>
    %cst_5 = arith.constant 1.280000e+02 : f32
    %5 = vector.broadcast %cst_5 : f32 to vector<128x1xf32>
    %6 = arith.divf %4, %5 : vector<128x1xf32>
    %7 = vector.broadcast %6 : vector<128x1xf32> to vector<128x128xf32>
    %8 = arith.subf %0, %7 : vector<128x128xf32>
    %9 = arith.mulf %8, %8 : vector<128x128xf32>
    %cst_6 = arith.constant dense<0.000000e+00> : vector<128xf32>
    %10 = vector.multi_reduction <add>, %9, %cst_6 [1] : vector<128x128xf32> to vector<128xf32>
    %11 = vector.shape_cast %10 : vector<128xf32> to vector<128x1xf32>
    %cst_7 = arith.constant 1.280000e+02 : f32
    %12 = vector.broadcast %cst_7 : f32 to vector<128x1xf32>
    %13 = arith.divf %11, %12 : vector<128x1xf32>
    %14 = vector.broadcast %6 : vector<128x1xf32> to vector<128x128xf32>
    %15 = arith.subf %0, %14 : vector<128x128xf32>
    %cst_8 = arith.constant 9.99999974E-6 : f32
    %16 = vector.broadcast %cst_8 : f32 to vector<128x1xf32>
    %17 = arith.addf %13, %16 : vector<128x1xf32>
    %18 = math.rsqrt %17 : vector<128x1xf32>
    %19 = vector.broadcast %18 : vector<128x1xf32> to vector<128x128xf32>
    %20 = arith.mulf %15, %19 : vector<128x128xf32>
    %21 = vector.broadcast %1 : vector<1x128xf32> to vector<128x128xf32>
    %22 = arith.mulf %20, %21 : vector<128x128xf32>
    %23 = vector.broadcast %2 : vector<1x128xf32> to vector<128x128xf32>
    %24 = arith.addf %22, %23 : vector<128x128xf32>
    %25 = arith.truncf %24 : vector<128x128xf32> to vector<128x128xbf16>
    %c0_9 = arith.constant 0 : index
    %c0_10 = arith.constant 0 : index
    %26 = vector.load %arg4[%c0_9, %c0_10] : memref<128x512xbf16, #tpu.memory_space<vmem>>, vector<128x512xbf16>
    %cst_11 = arith.constant dense<0.000000e+00> : vector<128x512xf32>
    %27 = tpu.matmul %25, %26, %cst_11 {dimension_numbers = #tpu.dot_dimension_numbers<[1], [0], [0], [1], [0, 0, 1, 1], [], []>} : vector<128x128xbf16>, vector<128x512xbf16>, vector<128x512xf32> -> vector<128x512xf32>
    %c0_12 = arith.constant 0 : index
    %c0_13 = arith.constant 0 : index
    %28 = vector.load %arg5[%c0_12, %c0_13] : memref<1x512xf32, #tpu.memory_space<vmem>>, vector<1x512xf32>
    %29 = vector.broadcast %28 : vector<1x512xf32> to vector<128x512xf32>
    %30 = arith.addf %27, %29 : vector<128x512xf32>
    %cst_14 = arith.constant 0.000000e+00 : f32
    %31 = vector.broadcast %cst_14 : f32 to vector<128x512xf32>
    %32 = arith.subf %31, %30 : vector<128x512xf32>
    %33 = math.exp %32 : vector<128x512xf32>
    %cst_15 = arith.constant 1.000000e+00 : f32
    %34 = vector.broadcast %cst_15 : f32 to vector<128x512xf32>
    %35 = arith.addf %34, %33 : vector<128x512xf32>
    %cst_16 = arith.constant 1.000000e+00 : f32
    %36 = vector.broadcast %cst_16 : f32 to vector<128x512xf32>
    %37 = arith.divf %36, %35 : vector<128x512xf32>
    %38 = arith.mulf %30, %37 : vector<128x512xf32>
    %39 = arith.truncf %38 : vector<128x512xf32> to vector<128x512xbf16>
    %c0_17 = arith.constant 0 : index
    %c0_18 = arith.constant 0 : index
    %40 = vector.load %arg6[%c0_17, %c0_18] : memref<512x128xbf16, #tpu.memory_space<vmem>>, vector<512x128xbf16>
    %cst_19 = arith.constant dense<0.000000e+00> : vector<128x128xf32>
    %41 = tpu.matmul %39, %40, %cst_19 {dimension_numbers = #tpu.dot_dimension_numbers<[1], [0], [0], [1], [0, 0, 1, 1], [], []>} : vector<128x512xbf16>, vector<512x128xbf16>, vector<128x128xf32> -> vector<128x128xf32>
    %c0_20 = arith.constant 0 : index
    %c0_21 = arith.constant 0 : index
    %42 = vector.load %arg7[%c0_20, %c0_21] : memref<1x128xf32, #tpu.memory_space<vmem>>, vector<1x128xf32>
    %43 = vector.broadcast %42 : vector<1x128xf32> to vector<128x128xf32>
    %44 = arith.addf %41, %43 : vector<128x128xf32>
    %cst_22 = arith.constant 5.000000e-01 : f32
    %45 = vector.broadcast %cst_22 : f32 to vector<128x128xf32>
    %46 = arith.mulf %45, %44 : vector<128x128xf32>
    %47 = arith.addf %0, %46 : vector<128x128xf32>
    %c0_23 = arith.constant 0 : index
    %c0_24 = arith.constant 0 : index
    %48 = vector.load %arg10[%c0_23, %c0_24] : memref<128x128xf32, #tpu.memory_space<vmem>>, vector<128x128xf32>
    tpu.vector_store %arg10[%c0_23, %c0_24], %47 {strides = array<i32>} : memref<128x128xf32, #tpu.memory_space<vmem>>, vector<128x128xf32>,
    return
  }
  func.func @transform_0(%arg0: i32) -> (i32, i32) {
    %c0_i32 = arith.constant 0 : i32
    %c0_i32_0 = arith.constant 0 : i32
    return %arg0, %c0_i32 : i32, i32
  }
  func.func @transform_1(%arg0: i32) -> (i32, i32) {
    %c0_i32 = arith.constant 0 : i32
    %c0_i32_0 = arith.constant 0 : i32
    %c0_i32_1 = arith.constant 0 : i32
    return %c0_i32, %c0_i32_0 : i32, i32
  }
  func.func @transform_2(%arg0: i32) -> (i32, i32) {
    %c0_i32 = arith.constant 0 : i32
    %c0_i32_0 = arith.constant 0 : i32
    %c0_i32_1 = arith.constant 0 : i32
    return %c0_i32, %c0_i32_0 : i32, i32
  }
  func.func @transform_3(%arg0: i32) -> (i32, i32) {
    %c0_i32 = arith.constant 0 : i32
    %c0_i32_0 = arith.constant 0 : i32
    %c0_i32_1 = arith.constant 0 : i32
    return %c0_i32, %c0_i32_0 : i32, i32
  }
  func.func @transform_4(%arg0: i32) -> (i32, i32) {
    %c0_i32 = arith.constant 0 : i32
    %c0_i32_0 = arith.constant 0 : i32
    %c0_i32_1 = arith.constant 0 : i32
    return %c0_i32, %c0_i32_0 : i32, i32
  }
  func.func @transform_5(%arg0: i32) -> (i32, i32) {
    %c0_i32 = arith.constant 0 : i32
    %c0_i32_0 = arith.constant 0 : i32
    %c0_i32_1 = arith.constant 0 : i32
    return %c0_i32, %c0_i32_0 : i32, i32
  }
  func.func @transform_6(%arg0: i32) -> (i32, i32) {
    %c0_i32 = arith.constant 0 : i32
    %c0_i32_0 = arith.constant 0 : i32
    %c0_i32_1 = arith.constant 0 : i32
    return %c0_i32, %c0_i32_0 : i32, i32
  }
  func.func @transform_7(%arg0: i32) -> (i32, i32) {
    %c0_i32 = arith.constant 0 : i32
    %c0_i32_0 = arith.constant 0 : i32
    %c0_i32_1 = arith.constant 0 : i32
    return %c0_i32, %c0_i32_0 : i32, i32
  }
  func.func @transform_8(%arg0: i32) -> (i32, i32) {
    %c0_i32 = arith.constant 0 : i32
    %c0_i32_0 = arith.constant 0 : i32
    %c0_i32_1 = arith.constant 0 : i32
    return %c0_i32, %c0_i32_0 : i32, i32
  }
  func.func @transform_9(%arg0: i32) -> (i32, i32) {
    %c0_i32 = arith.constant 0 : i32
    %c0_i32_0 = arith.constant 0 : i32
    return %arg0, %c0_i32 : i32, i32
  }
}

</mosaic_0001>

<llo_original>
// kernel: tpu_custom_call.1
$region0: #{tpu_custom_call.1}
  #allocation0 [shape = 'u32[]', space=smem, size = 0x4, offset = 0x4, fixed_abs, tag = 'smem constant byte address 0x4 - core index']
  #allocation1 [shape = 'u32[144,128]{1,0:T(1,128)}', space=vmem, size = 0x12000, scoped, tag = 'internal scratch']
  %s0 = inlined_call_operand.hbm [shape: f32[256,128], index: 0, kind: input, shape index: {}]
  %s1 = inlined_call_operand.vmem [shape: f32[1,128], index: 1, kind: input, shape index: {}]
  %s2 = inlined_call_operand.vmem [shape: f32[1,128], index: 2, kind: input, shape index: {}]
  %s3 = inlined_call_operand.hbm [shape: bf16[128,512], index: 3, kind: input, shape index: {}]
  %s4 = inlined_call_operand.vmem [shape: f32[1,512], index: 4, kind: input, shape index: {}]
  %s5 = inlined_call_operand.hbm [shape: bf16[512,128], index: 5, kind: input, shape index: {}]
  %s6 = inlined_call_operand.vmem [shape: f32[1,128], index: 6, kind: input, shape index: {}]
  %s7 = inlined_call_operand.vmem [shape: f32[1,128], index: 7, kind: input, shape index: {}]
  %s8 = inlined_call_operand.vmem [shape: f32[1,128], index: 8, kind: input, shape index: {}]
  %s9 = inlined_call_operand.hbm [shape: f32[256,128], index: 9, kind: output, shape index: {}]
  %s10 = sld [smem:[#allocation0]]
  $region81: #{tpu_custom_call.1} parent=0
    _
  %s12 = ssub.s32 1, %s10
  %s13 = scalar_select 0, %s12, %s10
  $region1: #{tpu_custom_call.1} parent=0
    #allocation2 [shape = 'u8[131072]{0}', space=vmem, size = 0x20000, scoped, tag = 'input window, operand 0']
    #allocation3 [shape = 's32[2]{0}', space=sflag, size = 0x8, scoped, tag = 'scoped memory for tpu_custom_call.1']
    #allocation4 [shape = 's32[2]{0}', space=sflag, size = 0x8, scoped, tag = 'scoped memory for tpu_custom_call.1']
    #allocation5 [shape = 'u8[131072]{0}', space=vmem, size = 0x20000, scoped, tag = 'input window, operand 3, single buffered']
    #allocation6 [shape = 's32[1]{0}', space=sflag, size = 0x4, scoped, tag = 'scoped memory for tpu_custom_call.1']
    #allocation7 [shape = 'u8[131072]{0}', space=vmem, size = 0x20000, scoped, tag = 'input window, operand 5, single buffered']
    #allocation8 [shape = 'u8[131072]{0}', space=vmem, size = 0x20000, scoped, tag = 'output window, operand 0']
    %14 = vsyncpa [#allocation3], 0
    %s15 = scalar_lea.sflag [#allocation3], 1
    %16 = vsyncpa %s15, 0
    %17 = vsyncpa [#allocation6], 0
    %18 = vsyncpa [#allocation4], 0
    %s19 = scalar_lea.sflag [#allocation4], 1
    %20 = vsyncpa %s19, 0
    loop: start=0, step=1, limit=4
    $region2: #{tpu_custom_call.1} parent=1 // loop_pre_header
      _
    $region3: #{tpu_custom_call.1} parent=1 // loop_header
      %s22 = sphi 0, %s26
      %p23 = scmp.ge.s32.totalorder %s22, 4
      %s32 = sphi 0, %s34
      %s35 = sphi 0, %s32
      %s36 = sphi 0, %s35
      %s52 = sphi 0, %s36
      %s56 = sphi 0, %s56
      %s58 = sphi 0, %s56
      %s59 = sphi 0, %s58
      %s73 = sphi 0, %s59
      %s77 = sphi 0, %s77
      %s79 = sphi 0, %s77
      %s80 = sphi 0, %s79
      %s94 = sphi 0, %s80
      %s98 = sphi 0, %s98
      %s100 = sphi 0, %s98
      %s101 = sphi 0, %s100
      %s115 = sphi 0, %s101
      %s119 = sphi 0, %s119
      %s121 = sphi 0, %s119
      %s122 = sphi 0, %s121
      %s136 = sphi 0, %s122
      %s140 = sphi 0, %s140
      %s142 = sphi 0, %s140
      %s143 = sphi 0, %s142
      %s157 = sphi 0, %s143
      %s161 = sphi 0, %s161
      %s163 = sphi 0, %s161
      %s164 = sphi 0, %s163
      %s178 = sphi 0, %s164
      %s182 = sphi 0, %s182
      %s184 = sphi 0, %s182
      %s185 = sphi 0, %s184
      %s199 = sphi 0, %s185
      %s203 = sphi 0, %s203
      %s205 = sphi 0, %s203
      %s206 = sphi 0, %s205
      %s220 = sphi 0, %s206
      %s226 = sphi 0, %s228
      %s229 = sphi 0, %s226
      %s230 = sphi 0, %s229
      %s246 = sphi 0, %s230
    $region4: #{tpu_custom_call.1} parent=1 // loop_header_branch
      %25 = sbr.rel (%p23) target = $region8
    $region5: #{tpu_custom_call.1} parent=1 // loop_body
      %s27 = ssub.s32 %s22, 1
      %s28 = ssub.s32 %s22, 2
      %s29 = sadd.s32 %s22, 1
      %s30 = ssub.s32 %s22, %s29
      %p31 = scmp.eq.s32.totalorder %s30, 0
      %s33 = sadd.s32 %s32, 1
      %s34 = scalar_select %p31, %s32, %s33
      %p37 = pneg %p31
      %p38 = scmp.eq.s32.totalorder %s22, 1
      %p39 = por %p37, %p38
      %p40 = scmp.ne.s32.totalorder %s32, %s35
      %p41 = scmp.eq.s32.totalorder %s22, 0
      %p42 = por %p40, %p41
      %p43 = scmp.ne.s32.totalorder %s32, %s35
      %p44 = scmp.eq.s32.totalorder %s27, 1
      %p45 = por %p43, %p44
      %p46 = scmp.ne.s32.totalorder %s35, %s36
      %p47 = scmp.eq.s32.totalorder %s27, 0
      %p48 = por %p46, %p47
      %p49 = scmp.ne.s32.totalorder %s35, %s36
      %p50 = scmp.eq.s32.totalorder %s28, 1
      %p51 = por %p49, %p50
      %p53 = scmp.ne.s32.totalorder %s36, %s52
      %p54 = scmp.eq.s32.totalorder %s28, 0
      %p55 = por %p53, %p54
      %s57 = sadd.s32 %s56, 1
      %p60 = scmp.eq.s32.totalorder %s22, 1
      %p61 = scmp.ne.s32.totalorder %s56, %s58
      %p62 = scmp.eq.s32.totalorder %s22, 0
      %p63 = por %p61, %p62
      %p64 = scmp.ne.s32.totalorder %s56, %s58
      %p65 = scmp.eq.s32.totalorder %s27, 1
      %p66 = por %p64, %p65
      %p67 = scmp.ne.s32.totalorder %s58, %s59
      %p68 = scmp.eq.s32.totalorder %s27, 0
      %p69 = por %p67, %p68
      %p70 = scmp.ne.s32.totalorder %s58, %s59
      %p71 = scmp.eq.s32.totalorder %s28, 1
      %p72 = por %p70, %p71
      %p74 = scmp.ne.s32.totalorder %s59, %s73
      %p75 = scmp.eq.s32.totalorder %s28, 0
      %p76 = por %p74, %p75
      %s78 = sadd.s32 %s77, 1
      %p81 = scmp.eq.s32.totalorder %s22, 1
      %p82 = scmp.ne.s32.totalorder %s77, %s79
      %p83 = scmp.eq.s32.totalorder %s22, 0
      %p84 = por %p82, %p83
      %p85 = scmp.ne.s32.totalorder %s77, %s79
      %p86 = scmp.eq.s32.totalorder %s27, 1
      %p87 = por %p85, %p86
      %p88 = scmp.ne.s32.totalorder %s79, %s80
      %p89 = scmp.eq.s32.totalorder %s27, 0
      %p90 = por %p88, %p89
      %p91 = scmp.ne.s32.totalorder %s79, %s80
      %p92 = scmp.eq.s32.totalorder %s28, 1
      %p93 = por %p91, %p92
      %p95 = scmp.ne.s32.totalorder %s80, %s94
      %p96 = scmp.eq.s32.totalorder %s28, 0
      %p97 = por %p95, %p96
      %s99 = sadd.s32 %s98, 1
      %p102 = scmp.eq.s32.totalorder %s22, 1
      %p103 = scmp.ne.s32.totalorder %s98, %s100
      %p104 = scmp.eq.s32.totalorder %s22, 0
      %p105 = por %p103, %p104
      %p106 = scmp.ne.s32.totalorder %s98, %s100
      %p107 = scmp.eq.s32.totalorder %s27, 1
      %p108 = por %p106, %p107
      %p109 = scmp.ne.s32.totalorder %s100, %s101
      %p110 = scmp.eq.s32.totalorder %s27, 0
      %p111 = por %p109, %p110
      %p112 = scmp.ne.s32.totalorder %s100, %s101
      %p113 = scmp.eq.s32.totalorder %s28, 1
      %p114 = por %p112, %p113
      %p116 = scmp.ne.s32.totalorder %s101, %s115
      %p117 = scmp.eq.s32.totalorder %s28, 0
      %p118 = por %p116, %p117
      %s120 = sadd.s32 %s119, 1
      %p123 = scmp.eq.s32.totalorder %s22, 1
      %p124 = scmp.ne.s32.totalorder %s119, %s121
      %p125 = scmp.eq.s32.totalorder %s22, 0
      %p126 = por %p124, %p125
      %p127 = scmp.ne.s32.totalorder %s119, %s121
      %p128 = scmp.eq.s32.totalorder %s27, 1
      %p129 = por %p127, %p128
      %p130 = scmp.ne.s32.totalorder %s121, %s122
      %p131 = scmp.eq.s32.totalorder %s27, 0
      %p132 = por %p130, %p131
      %p133 = scmp.ne.s32.totalorder %s121, %s122
      %p134 = scmp.eq.s32.totalorder %s28, 1
      %p135 = por %p133, %p134
      %p137 = scmp.ne.s32.totalorder %s122, %s136
      %p138 = scmp.eq.s32.totalorder %s28, 0
      %p139 = por %p137, %p138
      %s141 = sadd.s32 %s140, 1
      %p144 = scmp.eq.s32.totalorder %s22, 1
      %p145 = scmp.ne.s32.totalorder %s140, %s142
      %p146 = scmp.eq.s32.totalorder %s22, 0
      %p147 = por %p145, %p146
      %p148 = scmp.ne.s32.totalorder %s140, %s142
      %p149 = scmp.eq.s32.totalorder %s27, 1
      %p150 = por %p148, %p149
      %p151 = scmp.ne.s32.totalorder %s142, %s143
      %p152 = scmp.eq.s32.totalorder %s27, 0
      %p153 = por %p151, %p152
      %p154 = scmp.ne.s32.totalorder %s142, %s143
      %p155 = scmp.eq.s32.totalorder %s28, 1
      %p156 = por %p154, %p155
      %p158 = scmp.ne.s32.totalorder %s143, %s157
      %p159 = scmp.eq.s32.totalorder %s28, 0
      %p160 = por %p158, %p159
      %s162 = sadd.s32 %s161, 1
      %p165 = scmp.eq.s32.totalorder %s22, 1
      %p166 = scmp.ne.s32.totalorder %s161, %s163
      %p167 = scmp.eq.s32.totalorder %s22, 0
      %p168 = por %p166, %p167
      %p169 = scmp.ne.s32.totalorder %s161, %s163
      %p170 = scmp.eq.s32.totalorder %s27, 1
      %p171 = por %p169, %p170
      %p172 = scmp.ne.s32.totalorder %s163, %s164
      %p173 = scmp.eq.s32.totalorder %s27, 0
      %p174 = por %p172, %p173
      %p175 = scmp.ne.s32.totalorder %s163, %s164
      %p176 = scmp.eq.s32.totalorder %s28, 1
      %p177 = por %p175, %p176
      %p179 = scmp.ne.s32.totalorder %s164, %s178
      %p180 = scmp.eq.s32.totalorder %s28, 0
      %p181 = por %p179, %p180
      %s183 = sadd.s32 %s182, 1
      %p186 = scmp.eq.s32.totalorder %s22, 1
      %p187 = scmp.ne.s32.totalorder %s182, %s184
      %p188 = scmp.eq.s32.totalorder %s22, 0
      %p189 = por %p187, %p188
      %p190 = scmp.ne.s32.totalorder %s182, %s184
      %p191 = scmp.eq.s32.totalorder %s27, 1
      %p192 = por %p190, %p191
      %p193 = scmp.ne.s32.totalorder %s184, %s185
      %p194 = scmp.eq.s32.totalorder %s27, 0
      %p195 = por %p193, %p194
      %p196 = scmp.ne.s32.totalorder %s184, %s185
      %p197 = scmp.eq.s32.totalorder %s28, 1
      %p198 = por %p196, %p197
      %p200 = scmp.ne.s32.totalorder %s185, %s199
      %p201 = scmp.eq.s32.totalorder %s28, 0
      %p202 = por %p200, %p201
      %s204 = sadd.s32 %s203, 1
      %p207 = scmp.eq.s32.totalorder %s22, 1
      %p208 = scmp.ne.s32.totalorder %s203, %s205
      %p209 = scmp.eq.s32.totalorder %s22, 0
      %p210 = por %p208, %p209
      %p211 = scmp.ne.s32.totalorder %s203, %s205
      %p212 = scmp.eq.s32.totalorder %s27, 1
      %p213 = por %p211, %p212
      %p214 = scmp.ne.s32.totalorder %s205, %s206
      %p215 = scmp.eq.s32.totalorder %s27, 0
      %p216 = por %p214, %p215
      %p217 = scmp.ne.s32.totalorder %s205, %s206
      %p218 = scmp.eq.s32.totalorder %s28, 1
      %p219 = por %p217, %p218
      %p221 = scmp.ne.s32.totalorder %s206, %s220
      %p222 = scmp.eq.s32.totalorder %s28, 0
      %p223 = por %p221, %p222
      %s224 = ssub.s32 %s22, %s29
      %p225 = scmp.eq.s32.totalorder %s224, 0
      %s227 = sadd.s32 %s226, 1
      %s228 = scalar_select %p225, %s226, %s227
      %p231 = pneg %p225
      %p232 = scmp.eq.s32.totalorder %s22, 1
      %p233 = por %p231, %p232
      %p234 = scmp.ne.s32.totalorder %s226, %s229
      %p235 = scmp.eq.s32.totalorder %s22, 0
      %p236 = por %p234, %p235
      %p237 = scmp.ne.s32.totalorder %s226, %s229
      %p238 = scmp.eq.s32.totalorder %s27, 1
      %p239 = por %p237, %p238
      %p240 = scmp.ne.s32.totalorder %s229, %s230
      %p241 = scmp.eq.s32.totalorder %s27, 0
      %p242 = por %p240, %p241
      %p243 = scmp.ne.s32.totalorder %s229, %s230
      %p244 = scmp.eq.s32.totalorder %s28, 1
      %p245 = por %p243, %p244
      %p247 = scmp.ne.s32.totalorder %s230, %s246
      %p248 = scmp.eq.s32.totalorder %s28, 0
      %p249 = por %p247, %p248
      %p250 = scmp.le.s32.totalorder 1, %s22
      %p251 = scmp.lt.s32.totalorder %s22, 3
      %p252 = pnand %p250, %p251
      %p253 = pneg %p252
      // Predicated region
      $region9: #{tpu_custom_call.1} parent=5 // pred_check
        _
      $region10: #{tpu_custom_call.1} parent=5 // pred_check_branch
        %255 = sbr.rel (%p252) target = $region12
      $region11: #{tpu_custom_call.1} parent=5 // pred_region
        %s256 = ssub.s32 %s22, 1
        // Predicated region
        $region13: #{tpu_custom_call.1} parent=11 // pred_check
          %p257 = pneg %p69
        $region14: #{tpu_custom_call.1} parent=11 // pred_check_branch
          %259 = sbr.rel (%p257) target = $region16
        $region15: #{tpu_custom_call.1} parent=11 // pred_region
          _
        $region16: #{tpu_custom_call.1} parent=11 // pred_fallthru
          _
        // Predicated region
        $region17: #{tpu_custom_call.1} parent=11 // pred_check
          %p260 = pneg %p90
        $region18: #{tpu_custom_call.1} parent=11 // pred_check_branch
          %262 = sbr.rel (%p260) target = $region20
        $region19: #{tpu_custom_call.1} parent=11 // pred_region
          _
        $region20: #{tpu_custom_call.1} parent=11 // pred_fallthru
          _
        // Predicated region
        $region21: #{tpu_custom_call.1} parent=11 // pred_check
          %p263 = pneg %p111
        $region22: #{tpu_custom_call.1} parent=11 // pred_check_branch
          %265 = sbr.rel (%p263) target = $region24
        $region23: #{tpu_custom_call.1} parent=11 // pred_region
          %s267 = ssub.s32 4096, 4096
          %268 = vsyncadd [#allocation6], %s267
          %s269 = sshll.u32 [#allocation5], 4
          %s270 = int_to_ptr.vmem [resolvable:$true] %s269
          %275 = dma.hbm_to_vmem [thread:$0]  %s3, 4096, %s270, [#allocation6], 256, 256, 16
        $region24: #{tpu_custom_call.1} parent=11 // pred_fallthru
          _
        // Predicated region
        $region25: #{tpu_custom_call.1} parent=11 // pred_check
          %p276 = pneg %p132
        $region26: #{tpu_custom_call.1} parent=11 // pred_check_branch
          %278 = sbr.rel (%p276) target = $region28
        $region27: #{tpu_custom_call.1} parent=11 // pred_region
          _
        $region28: #{tpu_custom_call.1} parent=11 // pred_fallthru
          _
        // Predicated region
        $region29: #{tpu_custom_call.1} parent=11 // pred_check
          %p279 = pneg %p153
        $region30: #{tpu_custom_call.1} parent=11 // pred_check_branch
          %281 = sbr.rel (%p279) target = $region32
        $region31: #{tpu_custom_call.1} parent=11 // pred_region
          %s283 = ssub.s32 4096, 4096
          %284 = vsyncadd [#allocation6], %s283
          %s285 = sshll.u32 [#allocation7], 4
          %s286 = int_to_ptr.vmem [resolvable:$true] %s285
          %291 = dma.hbm_to_vmem [thread:$0]  %s5, 4096, %s286, [#allocation6], 64, 64, 4
        $region32: #{tpu_custom_call.1} parent=11 // pred_fallthru
          _
        // Predicated region
        $region33: #{tpu_custom_call.1} parent=11 // pred_check
          %p292 = pneg %p174
        $region34: #{tpu_custom_call.1} parent=11 // pred_check_branch
          %294 = sbr.rel (%p292) target = $region36
        $region35: #{tpu_custom_call.1} parent=11 // pred_region
          _
        $region36: #{tpu_custom_call.1} parent=11 // pred_fallthru
          _
        // Predicated region
        $region37: #{tpu_custom_call.1} parent=11 // pred_check
          %p295 = pneg %p195
        $region38: #{tpu_custom_call.1} parent=11 // pred_check_branch
          %297 = sbr.rel (%p295) target = $region40
        $region39: #{tpu_custom_call.1} parent=11 // pred_region
          _
        $region40: #{tpu_custom_call.1} parent=11 // pred_fallthru
          _
        // Predicated region
        $region41: #{tpu_custom_call.1} parent=11 // pred_check
          %p298 = pneg %p216
        $region42: #{tpu_custom_call.1} parent=11 // pred_check_branch
          %300 = sbr.rel (%p298) target = $region44
        $region43: #{tpu_custom_call.1} parent=11 // pred_region
          _
        $region44: #{tpu_custom_call.1} parent=11 // pred_fallthru
          _
      $region12: #{tpu_custom_call.1} parent=5 // pred_fallthru
        _
      %p301 = scmp.lt.s32.totalorder %s22, 2
      // Predicated region
      $region45: #{tpu_custom_call.1} parent=5 // pred_check
        %p302 = pneg %p301
      $region46: #{tpu_custom_call.1} parent=5 // pred_check_branch
        %304 = sbr.rel (%p302) target = $region48
      $region47: #{tpu_custom_call.1} parent=5 // pred_region
        // Predicated region
        $region49: #{tpu_custom_call.1} parent=47 // pred_check
          %p305 = pneg %p42
        $region50: #{tpu_custom_call.1} parent=47 // pred_check_branch
          %307 = sbr.rel (%p305) target = $region52
        $region51: #{tpu_custom_call.1} parent=47 // pred_region
          %s308 = sand.u32 %s32, 1
          %s309 = scalar_lea.sflag [#allocation3], %s308
          %s310 = sand.u32 %s32, 1
          %s311 = smul.addr %s310, 128
          %s312 = scalar_lea.vmem [#allocation2], %s311
          %s313 = smul.u32 16, %s22
          %s315 = ssub.s32 2048, 2048
          %316 = vsyncadd %s309, %s315
          %s317 = smul.addr %s313, 128
          %s318 = scalar_lea.hbm %s0, %s317
          %s319 = sshll.u32 %s312, 4
          %s320 = int_to_ptr.vmem [resolvable:$true] %s319
          %325 = dma.hbm_to_vmem [thread:$0]  %s318, 2048, %s320, %s309, 128, 128, 8
        $region52: #{tpu_custom_call.1} parent=47 // pred_fallthru
          _
      $region48: #{tpu_custom_call.1} parent=5 // pred_fallthru
        _
      %p326 = scmp.le.s32.totalorder 1, %s22
      %p327 = scmp.lt.s32.totalorder %s22, 3
      %p328 = pnand %p326, %p327
      %p329 = pneg %p328
      // Predicated region
      $region53: #{tpu_custom_call.1} parent=5 // pred_check
        _
      $region54: #{tpu_custom_call.1} parent=5 // pred_check_branch
        %331 = sbr.rel (%p328) target = $region56
      $region55: #{tpu_custom_call.1} parent=5 // pred_region
        %s332 = ssub.s32 %s22, 1
        %s333 = sand.u32 %s35, 1
        %s334 = scalar_lea.sflag [#allocation3], %s333
        %s335 = sand.u32 %s35, 1
        %s336 = smul.addr %s335, 128
        %s337 = scalar_lea.vmem [#allocation2], %s336
        // Predicated region
        $region57: #{tpu_custom_call.1} parent=55 // pred_check
          %p338 = pneg %p48
        $region58: #{tpu_custom_call.1} parent=55 // pred_check_branch
          %340 = sbr.rel (%p338) target = $region60
        $region59: #{tpu_custom_call.1} parent=55 // pred_region
          %341 = dma.done %s334, 2048
        $region60: #{tpu_custom_call.1} parent=55 // pred_fallthru
          _
        // Predicated region
        $region61: #{tpu_custom_call.1} parent=55 // pred_check
          %p342 = pneg %p111
        $region62: #{tpu_custom_call.1} parent=55 // pred_check_branch
          %344 = sbr.rel (%p342) target = $region64
        $region63: #{tpu_custom_call.1} parent=55 // pred_region
          %345 = dma.done [#allocation6], 4096
        $region64: #{tpu_custom_call.1} parent=55 // pred_fallthru
          _
        // Predicated region
        $region65: #{tpu_custom_call.1} parent=55 // pred_check
          %p346 = pneg %p153
        $region66: #{tpu_custom_call.1} parent=55 // pred_check_branch
          %348 = sbr.rel (%p346) target = $region68
        $region67: #{tpu_custom_call.1} parent=55 // pred_region
          %349 = dma.done [#allocation6], 4096
        $region68: #{tpu_custom_call.1} parent=55 // pred_fallthru
          _
        %s350 = sand.u32 %s35, 1
        %s351 = scalar_lea.sflag [#allocation3], %s350
        %s352 = sand.u32 %s35, 1
        %s353 = smul.addr %s352, 128
        %s354 = scalar_lea.vmem [#allocation2], %s353
        %p355 = pneg %p48
        %p356 = pneg %p45
        %p357 = pneg %p69
        %p358 = pneg %p66
        %p359 = pneg %p90
        %p360 = pneg %p87
        %p361 = pneg %p111
        %p362 = pneg %p108
        %p363 = pneg %p132
        %p364 = pneg %p129
        %p365 = pneg %p153
        %p366 = pneg %p150
        %p367 = pneg %p174
        %p368 = pneg %p171
        %p369 = pneg %p195
        %p370 = pneg %p192
        %p371 = pneg %p216
        %p372 = pneg %p213
        %p373 = pneg %p242
        %p374 = pneg %p239
        %s375 = sand.u32 %s229, 1
        %s376 = scalar_lea.sflag [#allocation4], %s375
        %s377 = sand.u32 %s229, 1
        %s378 = smul.addr %s377, 128
        %s379 = scalar_lea.vmem [#allocation8], %s378
        %s380 = smul.u32 16, %s27
        %s381 = smul.u32 16, %s27
        %v383 = vld [vmem:[%s337] sm:$0xff]
        %v384 = vld [vmem:[%s337 + $0x8] sm:$0xff]
        %v385 = vld [vmem:[%s337 + $0x10] sm:$0xff]
        %v386 = vld [vmem:[%s337 + $0x18] sm:$0xff]
        %v387 = vld [vmem:[%s337 + $0x20] sm:$0xff]
        %v388 = vld [vmem:[%s337 + $0x28] sm:$0xff]
        %v389 = vld [vmem:[%s337 + $0x30] sm:$0xff]
        %v390 = vld [vmem:[%s337 + $0x38] sm:$0xff]
        %v391 = vld [vmem:[%s337 + $0x40] sm:$0xff]
        %v392 = vld [vmem:[%s337 + $0x48] sm:$0xff]
        %v393 = vld [vmem:[%s337 + $0x50] sm:$0xff]
        %v394 = vld [vmem:[%s337 + $0x58] sm:$0xff]
        %v395 = vld [vmem:[%s337 + $0x60] sm:$0xff]
        %v396 = vld [vmem:[%s337 + $0x68] sm:$0xff]
        %v397 = vld [vmem:[%s337 + $0x70] sm:$0xff]
        %v398 = vld [vmem:[%s337 + $0x78] sm:$0xff]
        %v399 = vld [vmem:[%s1] sm:$0x1]
        %v400 = vld [vmem:[%s2] sm:$0x1]
        %401 = vadd.xlane.f32.xlu0 %v383
        %v402 = vpop.xlane.xlu0 %401
        %403 = vadd.xlane.f32.xlu0 %v384
        %v404 = vpop.xlane.xlu0 %403
        %405 = vadd.xlane.f32.xlu0 %v385
        %v406 = vpop.xlane.xlu0 %405
        %407 = vadd.xlane.f32.xlu0 %v386
        %v408 = vpop.xlane.xlu0 %407
        %409 = vadd.xlane.f32.xlu0 %v387
        %v410 = vpop.xlane.xlu0 %409
        %411 = vadd.xlane.f32.xlu0 %v388
        %v412 = vpop.xlane.xlu0 %411
        %413 = vadd.xlane.f32.xlu0 %v389
        %v414 = vpop.xlane.xlu0 %413
        %415 = vadd.xlane.f32.xlu0 %v390
        %v416 = vpop.xlane.xlu0 %415
        %417 = vadd.xlane.f32.xlu0 %v391
        %v418 = vpop.xlane.xlu0 %417
        %419 = vadd.xlane.f32.xlu0 %v392
        %v420 = vpop.xlane.xlu0 %419
        %421 = vadd.xlane.f32.xlu0 %v393
        %v422 = vpop.xlane.xlu0 %421
        %423 = vadd.xlane.f32.xlu0 %v394
        %v424 = vpop.xlane.xlu0 %423
        %425 = vadd.xlane.f32.xlu0 %v395
        %v426 = vpop.xlane.xlu0 %425
        %427 = vadd.xlane.f32.xlu0 %v396
        %v428 = vpop.xlane.xlu0 %427
        %429 = vadd.xlane.f32.xlu0 %v397
        %v430 = vpop.xlane.xlu0 %429
        %431 = vadd.xlane.f32.xlu0 %v398
        %v432 = vpop.xlane.xlu0 %431
        %v433 = vrcp.pop 128.0
        %v434 = vmul.f32 %v402, %v433
        %v435 = vmul.f32 %v404, %v433
        %v436 = vmul.f32 %v406, %v433
        %v437 = vmul.f32 %v408, %v433
        %v438 = vmul.f32 %v410, %v433
        %v439 = vmul.f32 %v412, %v433
        %v440 = vmul.f32 %v414, %v433
        %v441 = vmul.f32 %v416, %v433
        %v442 = vmul.f32 %v418, %v433
        %v443 = vmul.f32 %v420, %v433
        %v444 = vmul.f32 %v422, %v433
        %v445 = vmul.f32 %v424, %v433
        %v446 = vmul.f32 %v426, %v433
        %v447 = vmul.f32 %v428, %v433
        %v448 = vmul.f32 %v430, %v433
        %v449 = vmul.f32 %v432, %v433
        %v450 = vsub.f32 %v383, %v434
        %v451 = vsub.f32 %v384, %v435
        %v452 = vsub.f32 %v385, %v436
        %v453 = vsub.f32 %v386, %v437
        %v454 = vsub.f32 %v387, %v438
        %v455 = vsub.f32 %v388, %v439
        %v456 = vsub.f32 %v389, %v440
        %v457 = vsub.f32 %v390, %v441
        %v458 = vsub.f32 %v391, %v442
        %v459 = vsub.f32 %v392, %v443
        %v460 = vsub.f32 %v393, %v444
        %v461 = vsub.f32 %v394, %v445
        %v462 = vsub.f32 %v395, %v446
        %v463 = vsub.f32 %v396, %v447
        %v464 = vsub.f32 %v397, %v448
        %v465 = vsub.f32 %v398, %v449
        %v466 = vmul.f32 %v450, %v450
        %v467 = vmul.f32 %v451, %v451
        %v468 = vmul.f32 %v452, %v452
        %v469 = vmul.f32 %v453, %v453
        %v470 = vmul.f32 %v454, %v454
        %v471 = vmul.f32 %v455, %v455
        %v472 = vmul.f32 %v456, %v456
        %v473 = vmul.f32 %v457, %v457
        %v474 = vmul.f32 %v458, %v458
        %v475 = vmul.f32 %v459, %v459
        %v476 = vmul.f32 %v460, %v460
        %v477 = vmul.f32 %v461, %v461
        %v478 = vmul.f32 %v462, %v462
        %v479 = vmul.f32 %v463, %v463
        %v480 = vmul.f32 %v464, %v464
        %v481 = vmul.f32 %v465, %v465
        %482 = vadd.xlane.f32.xlu0 %v466
        %v483 = vpop.xlane.xlu0 %482
        %484 = vadd.xlane.f32.xlu0 %v467
        %v485 = vpop.xlane.xlu0 %484
        %486 = vadd.xlane.f32.xlu0 %v468
        %v487 = vpop.xlane.xlu0 %486
        %488 = vadd.xlane.f32.xlu0 %v469
        %v489 = vpop.xlane.xlu0 %488
        %490 = vadd.xlane.f32.xlu0 %v470
        %v491 = vpop.xlane.xlu0 %490
        %492 = vadd.xlane.f32.xlu0 %v471
        %v493 = vpop.xlane.xlu0 %492
        %494 = vadd.xlane.f32.xlu0 %v472
        %v495 = vpop.xlane.xlu0 %494
        %496 = vadd.xlane.f32.xlu0 %v473
        %v497 = vpop.xlane.xlu0 %496
        %498 = vadd.xlane.f32.xlu0 %v474
        %v499 = vpop.xlane.xlu0 %498
        %500 = vadd.xlane.f32.xlu0 %v475
        %v501 = vpop.xlane.xlu0 %500
        %502 = vadd.xlane.f32.xlu0 %v476
        %v503 = vpop.xlane.xlu0 %502
        %504 = vadd.xlane.f32.xlu0 %v477
        %v505 = vpop.xlane.xlu0 %504
        %506 = vadd.xlane.f32.xlu0 %v478
        %v507 = vpop.xlane.xlu0 %506
        %508 = vadd.xlane.f32.xlu0 %v479
        %v509 = vpop.xlane.xlu0 %508
        %510 = vadd.xlane.f32.xlu0 %v480
        %v511 = vpop.xlane.xlu0 %510
        %512 = vadd.xlane.f32.xlu0 %v481
        %v513 = vpop.xlane.xlu0 %512
        %v514 = vmul.f32 %v483, %v433
        %v515 = vmul.f32 %v485, %v433
        %v516 = vmul.f32 %v487, %v433
        %v517 = vmul.f32 %v489, %v433
        %v518 = vmul.f32 %v491, %v433
        %v519 = vmul.f32 %v493, %v433
        %v520 = vmul.f32 %v495, %v433
        %v521 = vmul.f32 %v497, %v433
        %v522 = vmul.f32 %v499, %v433
        %v523 = vmul.f32 %v501, %v433
        %v524 = vmul.f32 %v503, %v433
        %v525 = vmul.f32 %v505, %v433
        %v526 = vmul.f32 %v507, %v433
        %v527 = vmul.f32 %v509, %v433
        %v528 = vmul.f32 %v511, %v433
        %v529 = vmul.f32 %v513, %v433
        %v530 = vadd.f32 %v514, 1e-05
        %v531 = vadd.f32 %v515, 1e-05
        %v532 = vadd.f32 %v516, 1e-05
        %v533 = vadd.f32 %v517, 1e-05
        %v534 = vadd.f32 %v518, 1e-05
        %v535 = vadd.f32 %v519, 1e-05
        %v536 = vadd.f32 %v520, 1e-05
        %v537 = vadd.f32 %v521, 1e-05
        %v538 = vadd.f32 %v522, 1e-05
        %v539 = vadd.f32 %v523, 1e-05
        %v540 = vadd.f32 %v524, 1e-05
        %v541 = vadd.f32 %v525, 1e-05
        %v542 = vadd.f32 %v526, 1e-05
        %v543 = vadd.f32 %v527, 1e-05
        %v544 = vadd.f32 %v528, 1e-05
        %v545 = vadd.f32 %v529, 1e-05
        %v546 = vrsqrt.pop %v530
        %v547 = vrsqrt.pop %v531
        %v548 = vrsqrt.pop %v532
        %v549 = vrsqrt.pop %v533
        %v550 = vrsqrt.pop %v534
        %v551 = vrsqrt.pop %v535
        %v552 = vrsqrt.pop %v536
        %v553 = vrsqrt.pop %v537
        %v554 = vrsqrt.pop %v538
        %v555 = vrsqrt.pop %v539
        %v556 = vrsqrt.pop %v540
        %v557 = vrsqrt.pop %v541
        %v558 = vrsqrt.pop %v542
        %v559 = vrsqrt.pop %v543
        %v560 = vrsqrt.pop %v544
        %v561 = vrsqrt.pop %v545
        %v562 = vmul.f32 %v450, %v546
        %v563 = vmul.f32 %v451, %v547
        %v564 = vmul.f32 %v452, %v548
        %v565 = vmul.f32 %v453, %v549
        %v566 = vmul.f32 %v454, %v550
        %v567 = vmul.f32 %v455, %v551
        %v568 = vmul.f32 %v456, %v552
        %v569 = vmul.f32 %v457, %v553
        %v570 = vmul.f32 %v458, %v554
        %v571 = vmul.f32 %v459, %v555
        %v572 = vmul.f32 %v460, %v556
        %v573 = vmul.f32 %v461, %v557
        %v574 = vmul.f32 %v462, %v558
        %v575 = vmul.f32 %v463, %v559
        %v576 = vmul.f32 %v464, %v560
        %v577 = vmul.f32 %v465, %v561
        %v579 = vlaneseq
        %v580 = vshrl.u32 %v579, 7
        %v581 = vsub.s32 0, %v580
        %v582 = vrot.slane %v399, %v581
        %v584 = vmul.f32 %v562, %v582
        %v585 = vmul.f32 %v563, %v582
        %v586 = vmul.f32 %v564, %v582
        %v587 = vmul.f32 %v565, %v582
        %v588 = vmul.f32 %v566, %v582
        %v589 = vmul.f32 %v567, %v582
        %v590 = vmul.f32 %v568, %v582
        %v591 = vmul.f32 %v569, %v582
        %v592 = vmul.f32 %v570, %v582
        %v593 = vmul.f32 %v571, %v582
        %v594 = vmul.f32 %v572, %v582
        %v595 = vmul.f32 %v573, %v582
        %v596 = vmul.f32 %v574, %v582
        %v597 = vmul.f32 %v575, %v582
        %v598 = vmul.f32 %v576, %v582
        %v599 = vmul.f32 %v577, %v582
        %v601 = vlaneseq
        %v602 = vshrl.u32 %v601, 7
        %v603 = vsub.s32 0, %v602
        %v604 = vrot.slane %v400, %v603
        %v606 = vadd.f32 %v584, %v604
        %v607 = vadd.f32 %v585, %v604
        %v608 = vadd.f32 %v586, %v604
        %v609 = vadd.f32 %v587, %v604
        %v610 = vadd.f32 %v588, %v604
        %v611 = vadd.f32 %v589, %v604
        %v612 = vadd.f32 %v590, %v604
        %v613 = vadd.f32 %v591, %v604
        %v614 = vadd.f32 %v592, %v604
        %v615 = vadd.f32 %v593, %v604
        %v616 = vadd.f32 %v594, %v604
        %v617 = vadd.f32 %v595, %v604
        %v618 = vadd.f32 %v596, %v604
        %v619 = vadd.f32 %v597, %v604
        %v620 = vadd.f32 %v598, %v604
        %v621 = vadd.f32 %v599, %v604
        %v622 = vpack.c.bf16 %v607, %v606
        %v623 = vpack.c.bf16 %v609, %v608
        %v624 = vpack.c.bf16 %v611, %v610
        %v625 = vpack.c.bf16 %v613, %v612
        %v626 = vpack.c.bf16 %v615, %v614
        %v627 = vpack.c.bf16 %v617, %v616
        %v628 = vpack.c.bf16 %v619, %v618
        %v629 = vpack.c.bf16 %v621, %v620
        %v630 = vld [vmem:[#allocation5] sm:$0xff]
        %v631 = vld [vmem:[#allocation5 + $0x8] sm:$0xff]
        %v632 = vld [vmem:[#allocation5 + $0x10] sm:$0xff]
        %v633 = vld [vmem:[#allocation5 + $0x18] sm:$0xff]
        %v634 = vld [vmem:[#allocation5 + $0x20] sm:$0xff]
        %v635 = vld [vmem:[#allocation5 + $0x28] sm:$0xff]
        %v636 = vld [vmem:[#allocation5 + $0x30] sm:$0xff]
        %v637 = vld [vmem:[#allocation5 + $0x38] sm:$0xff]
        %v638 = vld [vmem:[#allocation5 + $0x40] sm:$0xff]
        %v639 = vld [vmem:[#allocation5 + $0x48] sm:$0xff]
        %v640 = vld [vmem:[#allocation5 + $0x50] sm:$0xff]
        %v641 = vld [vmem:[#allocation5 + $0x58] sm:$0xff]
        %v642 = vld [vmem:[#allocation5 + $0x60] sm:$0xff]
        %v643 = vld [vmem:[#allocation5 + $0x68] sm:$0xff]
        %v644 = vld [vmem:[#allocation5 + $0x70] sm:$0xff]
        %v645 = vld [vmem:[#allocation5 + $0x78] sm:$0xff]
        %v646 = vld [vmem:[#allocation5 + $0x80] sm:$0xff]
        %v647 = vld [vmem:[#allocation5 + $0x88] sm:$0xff]
        %v648 = vld [vmem:[#allocation5 + $0x90] sm:$0xff]
        %v649 = vld [vmem:[#allocation5 + $0x98] sm:$0xff]
        %v650 = vld [vmem:[#allocation5 + $0xa0] sm:$0xff]
        %v651 = vld [vmem:[#allocation5 + $0xa8] sm:$0xff]
        %v652 = vld [vmem:[#allocation5 + $0xb0] sm:$0xff]
        %v653 = vld [vmem:[#allocation5 + $0xb8] sm:$0xff]
        %v654 = vld [vmem:[#allocation5 + $0xc0] sm:$0xff]
        %v655 = vld [vmem:[#allocation5 + $0xc8] sm:$0xff]
        %v656 = vld [vmem:[#allocation5 + $0xd0] sm:$0xff]
        %v657 = vld [vmem:[#allocation5 + $0xd8] sm:$0xff]
        %v658 = vld [vmem:[#allocation5 + $0xe0] sm:$0xff]
        %v659 = vld [vmem:[#allocation5 + $0xe8] sm:$0xff]
        %v660 = vld [vmem:[#allocation5 + $0xf0] sm:$0xff]
        %v661 = vld [vmem:[#allocation5 + $0xf8] sm:$0xff]
        %v662 = vld [vmem:[%s4] sm:$0xf]
        %v664 = vlaneseq
        %v665 = vshrl.u32 %v664, 7
        %v666 = vsub.s32 0, %v665
        %v667 = vrot.slane %v662, %v666
        %v668 = vlaneseq
        %v669 = vshrl.u32 %v668, 7
        %v670 = vsub.s32 1, %v669
        %v671 = vrot.slane %v662, %v670
        %v672 = vlaneseq
        %v673 = vshrl.u32 %v672, 7
        %v674 = vsub.s32 2, %v673
        %v675 = vrot.slane %v662, %v674
        %v676 = vlaneseq
        %v677 = vshrl.u32 %v676, 7
        %v678 = vsub.s32 3, %v677
        %v679 = vrot.slane %v662, %v678
        %v716 = vunpack.c.l.b16 %v630
        %v717 = vunpack.c.h.b16 %v630
        %v718 = vunpack.c.l.b16 %v631
        %v719 = vunpack.c.h.b16 %v631
        %v720 = vunpack.c.l.b16 %v632
        %v721 = vunpack.c.h.b16 %v632
        %v722 = vunpack.c.l.b16 %v633
        %v723 = vunpack.c.h.b16 %v633
        %v724 = vunpack.c.l.b16 %v634
        %v725 = vunpack.c.h.b16 %v634
        %v726 = vunpack.c.l.b16 %v635
        %v727 = vunpack.c.h.b16 %v635
        %v728 = vunpack.c.l.b16 %v636
        %v729 = vunpack.c.h.b16 %v636
        %v730 = vunpack.c.l.b16 %v637
        %v731 = vunpack.c.h.b16 %v637
        %v732 = vunpack.c.l.b16 %v638
        %v733 = vunpack.c.h.b16 %v638
        %v734 = vunpack.c.l.b16 %v639
        %v735 = vunpack.c.h.b16 %v639
        %v736 = vunpack.c.l.b16 %v640
        %v737 = vunpack.c.h.b16 %v640
        %v738 = vunpack.c.l.b16 %v641
        %v739 = vunpack.c.h.b16 %v641
        %v740 = vunpack.c.l.b16 %v642
        %v741 = vunpack.c.h.b16 %v642
        %v742 = vunpack.c.l.b16 %v643
        %v743 = vunpack.c.h.b16 %v643
        %v744 = vunpack.c.l.b16 %v644
        %v745 = vunpack.c.h.b16 %v644
        %v746 = vunpack.c.l.b16 %v645
        %v747 = vunpack.c.h.b16 %v645
        %v748 = vunpack.c.l.b16 %v646
        %v749 = vunpack.c.h.b16 %v646
        %v750 = vunpack.c.l.b16 %v647
        %v751 = vunpack.c.h.b16 %v647
        %v752 = vunpack.c.l.b16 %v648
        %v753 = vunpack.c.h.b16 %v648
        %v754 = vunpack.c.l.b16 %v649
        %v755 = vunpack.c.h.b16 %v649
        %v756 = vunpack.c.l.b16 %v650
        %v757 = vunpack.c.h.b16 %v650
        %v758 = vunpack.c.l.b16 %v651
        %v759 = vunpack.c.h.b16 %v651
        %v760 = vunpack.c.l.b16 %v652
        %v761 = vunpack.c.h.b16 %v652
        %v762 = vunpack.c.l.b16 %v653
        %v763 = vunpack.c.h.b16 %v653
        %v764 = vunpack.c.l.b16 %v654
        %v765 = vunpack.c.h.b16 %v654
        %v766 = vunpack.c.l.b16 %v655
        %v767 = vunpack.c.h.b16 %v655
        %v768 = vunpack.c.l.b16 %v656
        %v769 = vunpack.c.h.b16 %v656
        %v770 = vunpack.c.l.b16 %v657
        %v771 = vunpack.c.h.b16 %v657
        %v772 = vunpack.c.l.b16 %v658
        %v773 = vunpack.c.h.b16 %v658
        %v774 = vunpack.c.l.b16 %v659
        %v775 = vunpack.c.h.b16 %v659
        %v776 = vunpack.c.l.b16 %v660
        %v777 = vunpack.c.h.b16 %v660
        %v778 = vunpack.c.l.b16 %v661
        %v779 = vunpack.c.h.b16 %v661
        %v780 = vpack.c.b16 %v720, %v716
        %v781 = vpack.c.b16 %v721, %v717
        %v782 = vpack.c.b16 %v722, %v718
        %v783 = vpack.c.b16 %v723, %v719
        %v784 = vpack.c.b16 %v728, %v724
        %v785 = vpack.c.b16 %v729, %v725
        %v786 = vpack.c.b16 %v730, %v726
        %v787 = vpack.c.b16 %v731, %v727
        %v788 = vpack.c.b16 %v736, %v732
        %v789 = vpack.c.b16 %v737, %v733
        %v790 = vpack.c.b16 %v738, %v734
        %v791 = vpack.c.b16 %v739, %v735
        %v792 = vpack.c.b16 %v744, %v740
        %v793 = vpack.c.b16 %v745, %v741
        %v794 = vpack.c.b16 %v746, %v742
        %v795 = vpack.c.b16 %v747, %v743
        %v796 = vpack.c.b16 %v752, %v748
        %v797 = vpack.c.b16 %v753, %v749
        %v798 = vpack.c.b16 %v754, %v750
        %v799 = vpack.c.b16 %v755, %v751
        %v800 = vpack.c.b16 %v760, %v756
        %v801 = vpack.c.b16 %v761, %v757
        %v802 = vpack.c.b16 %v762, %v758
        %v803 = vpack.c.b16 %v763, %v759
        %v804 = vpack.c.b16 %v768, %v764
        %v805 = vpack.c.b16 %v769, %v765
        %v806 = vpack.c.b16 %v770, %v766
        %v807 = vpack.c.b16 %v771, %v767
        %v808 = vpack.c.b16 %v776, %v772
        %v809 = vpack.c.b16 %v777, %v773
        %v810 = vpack.c.b16 %v778, %v774
        %v811 = vpack.c.b16 %v779, %v775
        %844 = vmatprep.subr.bf16.mxu0 %v781
        %845 = vmatpush1.bf16.msra.mxu0 %v780
        %846 = vmatprep.subr.bf16.mxu0 %v785
        %847 = vmatpush1.bf16.msra.mxu0 %v784
        %848 = vmatprep.subr.bf16.mxu0 %v789
        %849 = vmatpush1.bf16.msra.mxu0 %v788
        %850 = vmatprep.subr.bf16.mxu0 %v793
        %851 = vmatpush1.bf16.msra.mxu0 %v792
        %852 = vmatprep.subr.bf16.mxu0 %v797
        %853 = vmatpush1.bf16.msra.mxu0 %v796
        %854 = vmatprep.subr.bf16.mxu0 %v801
        %855 = vmatpush1.bf16.msra.mxu0 %v800
        %856 = vmatprep.subr.bf16.mxu0 %v805
        %857 = vmatpush1.bf16.msra.mxu0 %v804
        %858 = vmatprep.subr.bf16.mxu0 %v809
        %859 = vmatpush1.bf16.msra.mxu0 %v808
        %860 = vmatprep.subr.bf16.mxu0 0
        %861 = vmatpush1.bf16.msra.mxu0 0
        %862 = vmatprep.subr.bf16.mxu0 0
        %863 = vmatpush1.bf16.msra.mxu0 0
        %864 = vmatprep.subr.bf16.mxu0 0
        %865 = vmatpush1.bf16.msra.mxu0 0
        %866 = vmatprep.subr.bf16.mxu0 0
        %867 = vmatpush1.bf16.msra.mxu0 0
        %868 = vmatprep.subr.bf16.mxu0 0
        %869 = vmatpush1.bf16.msra.mxu0 0
        %870 = vmatprep.subr.bf16.mxu0 0
        %871 = vmatpush1.bf16.msra.mxu0 0
        %872 = vmatprep.subr.bf16.mxu0 0
        %873 = vmatpush1.bf16.msra.mxu0 0
        %874 = vmatprep.subr.bf16.mxu0 0
        %875 = vmatpush1.bf16.msra.mxu0 0
        %876 = vmatprep.mubr.bf16.mxu0 0
        %877 = vmatmul.mubr.bf16.gmra.mrb[0].mxu0 %v622
        %v878 = vpop.f32.mrb[0].mxu0
        %v879 = vadd.f32 %v667, %v878
        %v880 = vpop.f32.mrb[0].mxu0
        %v881 = vadd.f32 %v671, %v880
        %v882 = vpop.f32.mrb[0].mxu0
        %v883 = vadd.f32 %v667, %v882
        %v884 = vpop.f32.mrb[0].mxu0
        %v885 = vadd.f32 %v671, %v884
        %886 = vmatprep.mubr.bf16.mxu0 0
        %887 = vmatmul.mubr.bf16.gmra.mrb[0].mxu0 %v623
        %v888 = vpop.f32.mrb[0].mxu0
        %v889 = vadd.f32 %v667, %v888
        %v890 = vpop.f32.mrb[0].mxu0
        %v891 = vadd.f32 %v671, %v890
        %v892 = vpop.f32.mrb[0].mxu0
        %v893 = vadd.f32 %v667, %v892
        %v894 = vpop.f32.mrb[0].mxu0
        %v895 = vadd.f32 %v671, %v894
        %896 = vmatprep.mubr.bf16.mxu0 0
        %897 = vmatmul.mubr.bf16.gmra.mrb[0].mxu0 %v624
        %v898 = vpop.f32.mrb[0].mxu0
        %v899 = vadd.f32 %v667, %v898
        %v900 = vpop.f32.mrb[0].mxu0
        %v901 = vadd.f32 %v671, %v900
        %v902 = vpop.f32.mrb[0].mxu0
        %v903 = vadd.f32 %v667, %v902
        %v904 = vpop.f32.mrb[0].mxu0
        %v905 = vadd.f32 %v671, %v904
        %906 = vmatprep.mubr.bf16.mxu0 0
        %907 = vmatmul.mubr.bf16.gmra.mrb[0].mxu0 %v625
        %v908 = vpop.f32.mrb[0].mxu0
        %v909 = vadd.f32 %v667, %v908
        %v910 = vpop.f32.mrb[0].mxu0
        %v911 = vadd.f32 %v671, %v910
        %v912 = vpop.f32.mrb[0].mxu0
        %v913 = vadd.f32 %v667, %v912
        %v914 = vpop.f32.mrb[0].mxu0
        %v915 = vadd.f32 %v671, %v914
        %916 = vmatprep.mubr.bf16.mxu0 0
        %917 = vmatmul.mubr.bf16.gmra.mrb[0].mxu0 %v626
        %v918 = vpop.f32.mrb[0].mxu0
        %v919 = vadd.f32 %v667, %v918
        %v920 = vpop.f32.mrb[0].mxu0
        %v921 = vadd.f32 %v671, %v920
        %v922 = vpop.f32.mrb[0].mxu0
        %v923 = vadd.f32 %v667, %v922
        %v924 = vpop.f32.mrb[0].mxu0
        %v925 = vadd.f32 %v671, %v924
        %926 = vmatprep.mubr.bf16.mxu0 0
        %927 = vmatmul.mubr.bf16.gmra.mrb[0].mxu0 %v627
        %v928 = vpop.f32.mrb[0].mxu0
        %v929 = vadd.f32 %v667, %v928
        %v930 = vpop.f32.mrb[0].mxu0
        %v931 = vadd.f32 %v671, %v930
        %v932 = vpop.f32.mrb[0].mxu0
        %v933 = vadd.f32 %v667, %v932
        %v934 = vpop.f32.mrb[0].mxu0
        %v935 = vadd.f32 %v671, %v934
        %936 = vmatprep.mubr.bf16.mxu0 0
        %937 = vmatmul.mubr.bf16.gmra.mrb[0].mxu0 %v628
        %v938 = vpop.f32.mrb[0].mxu0
        %v939 = vadd.f32 %v667, %v938
        %v940 = vpop.f32.mrb[0].mxu0
        %v941 = vadd.f32 %v671, %v940
        %v942 = vpop.f32.mrb[0].mxu0
        %v943 = vadd.f32 %v667, %v942
        %v944 = vpop.f32.mrb[0].mxu0
        %v945 = vadd.f32 %v671, %v944
        %946 = vmatprep.mubr.bf16.mxu0 0
        %947 = vmatmul.mubr.bf16.gmra.mrb[0].mxu0 %v629
        %v948 = vpop.f32.mrb[0].mxu0
        %v949 = vadd.f32 %v667, %v948
        %v950 = vpop.f32.mrb[0].mxu0
        %v951 = vadd.f32 %v671, %v950
        %v952 = vpop.f32.mrb[0].mxu0
        %v953 = vadd.f32 %v667, %v952
        %v954 = vpop.f32.mrb[0].mxu0
        %v955 = vadd.f32 %v671, %v954
        %956 = vdwg.mxu0
        %957 = vmatprep.subr.bf16.mxu0 %v783
        %958 = vmatpush1.bf16.msra.mxu0 %v782
        %959 = vmatprep.subr.bf16.mxu0 %v787
        %960 = vmatpush1.bf16.msra.mxu0 %v786
        %961 = vmatprep.subr.bf16.mxu0 %v791
        %962 = vmatpush1.bf16.msra.mxu0 %v790
        %963 = vmatprep.subr.bf16.mxu0 %v795
        %964 = vmatpush1.bf16.msra.mxu0 %v794
        %965 = vmatprep.subr.bf16.mxu0 %v799
        %966 = vmatpush1.bf16.msra.mxu0 %v798
        %967 = vmatprep.subr.bf16.mxu0 %v803
        %968 = vmatpush1.bf16.msra.mxu0 %v802
        %969 = vmatprep.subr.bf16.mxu0 %v807
        %970 = vmatpush1.bf16.msra.mxu0 %v806
        %971 = vmatprep.subr.bf16.mxu0 %v811
        %972 = vmatpush1.bf16.msra.mxu0 %v810
        %973 = vmatprep.subr.bf16.mxu0 0
        %974 = vmatpush1.bf16.msra.mxu0 0
        %975 = vmatprep.subr.bf16.mxu0 0
        %976 = vmatpush1.bf16.msra.mxu0 0
        %977 = vmatprep.subr.bf16.mxu0 0
        %978 = vmatpush1.bf16.msra.mxu0 0
        %979 = vmatprep.subr.bf16.mxu0 0
        %980 = vmatpush1.bf16.msra.mxu0 0
        %981 = vmatprep.subr.bf16.mxu0 0
        %982 = vmatpush1.bf16.msra.mxu0 0
        %983 = vmatprep.subr.bf16.mxu0 0
        %984 = vmatpush1.bf16.msra.mxu0 0
        %985 = vmatprep.subr.bf16.mxu0 0
        %986 = vmatpush1.bf16.msra.mxu0 0
        %987 = vmatprep.subr.bf16.mxu0 0
        %988 = vmatpush1.bf16.msra.mxu0 0
        %989 = vmatprep.mubr.bf16.mxu0 0
        %990 = vmatmul.mubr.bf16.gmra.mrb[0].mxu0 %v622
        %v991 = vpop.f32.mrb[0].mxu0
        %v992 = vadd.f32 %v675, %v991
        %v993 = vpop.f32.mrb[0].mxu0
        %v994 = vadd.f32 %v679, %v993
        %v995 = vpop.f32.mrb[0].mxu0
        %v996 = vadd.f32 %v675, %v995
        %v997 = vpop.f32.mrb[0].mxu0
        %v998 = vadd.f32 %v679, %v997
        %999 = vmatprep.mubr.bf16.mxu0 0
        %1000 = vmatmul.mubr.bf16.gmra.mrb[0].mxu0 %v623
        %v1001 = vpop.f32.mrb[0].mxu0
        %v1002 = vadd.f32 %v675, %v1001
        %v1003 = vpop.f32.mrb[0].mxu0
        %v1004 = vadd.f32 %v679, %v1003
        %v1005 = vpop.f32.mrb[0].mxu0
        %v1006 = vadd.f32 %v675, %v1005
        %v1007 = vpop.f32.mrb[0].mxu0
        %v1008 = vadd.f32 %v679, %v1007
        %1009 = vmatprep.mubr.bf16.mxu0 0
        %1010 = vmatmul.mubr.bf16.gmra.mrb[0].mxu0 %v624
        %v1011 = vpop.f32.mrb[0].mxu0
        %v1012 = vadd.f32 %v675, %v1011
        %v1013 = vpop.f32.mrb[0].mxu0
        %v1014 = vadd.f32 %v679, %v1013
        %v1015 = vpop.f32.mrb[0].mxu0
        %v1016 = vadd.f32 %v675, %v1015
        %v1017 = vpop.f32.mrb[0].mxu0
        %v1018 = vadd.f32 %v679, %v1017
        %1019 = vmatprep.mubr.bf16.mxu0 0
        %1020 = vmatmul.mubr.bf16.gmra.mrb[0].mxu0 %v625
        %v1021 = vpop.f32.mrb[0].mxu0
        %v1022 = vadd.f32 %v675, %v1021
        %v1023 = vpop.f32.mrb[0].mxu0
        %v1024 = vadd.f32 %v679, %v1023
        %v1025 = vpop.f32.mrb[0].mxu0
        %v1026 = vadd.f32 %v675, %v1025
        %v1027 = vpop.f32.mrb[0].mxu0
        %v1028 = vadd.f32 %v679, %v1027
        %1029 = vmatprep.mubr.bf16.mxu0 0
        %1030 = vmatmul.mubr.bf16.gmra.mrb[0].mxu0 %v626
        %v1031 = vpop.f32.mrb[0].mxu0
        %v1032 = vadd.f32 %v675, %v1031
        %v1033 = vpop.f32.mrb[0].mxu0
        %v1034 = vadd.f32 %v679, %v1033
        %v1035 = vpop.f32.mrb[0].mxu0
        %v1036 = vadd.f32 %v675, %v1035
        %v1037 = vpop.f32.mrb[0].mxu0
        %v1038 = vadd.f32 %v679, %v1037
        %1039 = vmatprep.mubr.bf16.mxu0 0
        %1040 = vmatmul.mubr.bf16.gmra.mrb[0].mxu0 %v627
        %v1041 = vpop.f32.mrb[0].mxu0
        %v1042 = vadd.f32 %v675, %v1041
        %v1043 = vpop.f32.mrb[0].mxu0
        %v1044 = vadd.f32 %v679, %v1043
        %v1045 = vpop.f32.mrb[0].mxu0
        %v1046 = vadd.f32 %v675, %v1045
        %v1047 = vpop.f32.mrb[0].mxu0
        %v1048 = vadd.f32 %v679, %v1047
        %1049 = vmatprep.mubr.bf16.mxu0 0
        %1050 = vmatmul.mubr.bf16.gmra.mrb[0].mxu0 %v628
        %v1051 = vpop.f32.mrb[0].mxu0
        %v1052 = vadd.f32 %v675, %v1051
        %v1053 = vpop.f32.mrb[0].mxu0
        %v1054 = vadd.f32 %v679, %v1053
        %v1055 = vpop.f32.mrb[0].mxu0
        %v1056 = vadd.f32 %v675, %v1055
        %v1057 = vpop.f32.mrb[0].mxu0
        %v1058 = vadd.f32 %v679, %v1057
        %1059 = vmatprep.mubr.bf16.mxu0 0
        %1060 = vmatmul.mubr.bf16.gmra.mrb[0].mxu0 %v629
        %v1061 = vpop.f32.mrb[0].mxu0
        %v1062 = vadd.f32 %v675, %v1061
        %v1063 = vpop.f32.mrb[0].mxu0
        %v1064 = vadd.f32 %v679, %v1063
        %v1065 = vpop.f32.mrb[0].mxu0
        %v1066 = vadd.f32 %v675, %v1065
        %v1067 = vpop.f32.mrb[0].mxu0
        %v1068 = vadd.f32 %v679, %v1067
        %1069 = vdwg.mxu0
        %v1070 = vsub.f32 0.0, %v879
        %v1071 = vsub.f32 0.0, %v881
        %v1072 = vsub.f32 0.0, %v992
        %v1073 = vsub.f32 0.0, %v994
        %v1074 = vsub.f32 0.0, %v883
        %v1075 = vsub.f32 0.0, %v885
        %v1076 = vsub.f32 0.0, %v996
        %v1077 = vsub.f32 0.0, %v998
        %v1078 = vsub.f32 0.0, %v889
        %v1079 = vsub.f32 0.0, %v891
        %v1080 = vsub.f32 0.0, %v1002
        %v1081 = vsub.f32 0.0, %v1004
        %v1082 = vsub.f32 0.0, %v893
        %v1083 = vsub.f32 0.0, %v895
        %v1084 = vsub.f32 0.0, %v1006
        %v1085 = vsub.f32 0.0, %v1008
        %v1086 = vsub.f32 0.0, %v899
        %v1087 = vsub.f32 0.0, %v901
        %v1088 = vsub.f32 0.0, %v1012
        %v1089 = vsub.f32 0.0, %v1014
        %v1090 = vsub.f32 0.0, %v903
        %v1091 = vsub.f32 0.0, %v905
        %v1092 = vsub.f32 0.0, %v1016
        %v1093 = vsub.f32 0.0, %v1018
        %v1094 = vsub.f32 0.0, %v909
        %v1095 = vsub.f32 0.0, %v911
        %v1096 = vsub.f32 0.0, %v1022
        %v1097 = vsub.f32 0.0, %v1024
        %v1098 = vsub.f32 0.0, %v913
        %v1099 = vsub.f32 0.0, %v915
        %v1100 = vsub.f32 0.0, %v1026
        %v1101 = vsub.f32 0.0, %v1028
        %v1102 = vsub.f32 0.0, %v919
        %v1103 = vsub.f32 0.0, %v921
        %v1104 = vsub.f32 0.0, %v1032
        %v1105 = vsub.f32 0.0, %v1034
        %v1106 = vsub.f32 0.0, %v923
        %v1107 = vsub.f32 0.0, %v925
        %v1108 = vsub.f32 0.0, %v1036
        %v1109 = vsub.f32 0.0, %v1038
        %v1110 = vsub.f32 0.0, %v929
        %v1111 = vsub.f32 0.0, %v931
        %v1112 = vsub.f32 0.0, %v1042
        %v1113 = vsub.f32 0.0, %v1044
        %v1114 = vsub.f32 0.0, %v933
        %v1115 = vsub.f32 0.0, %v935
        %v1116 = vsub.f32 0.0, %v1046
        %v1117 = vsub.f32 0.0, %v1048
        %v1118 = vsub.f32 0.0, %v939
        %v1119 = vsub.f32 0.0, %v941
        %v1120 = vsub.f32 0.0, %v1052
        %v1121 = vsub.f32 0.0, %v1054
        %v1122 = vsub.f32 0.0, %v943
        %v1123 = vsub.f32 0.0, %v945
        %v1124 = vsub.f32 0.0, %v1056
        %v1125 = vsub.f32 0.0, %v1058
        %v1126 = vsub.f32 0.0, %v949
        %v1127 = vsub.f32 0.0, %v951
        %v1128 = vsub.f32 0.0, %v1062
        %v1129 = vsub.f32 0.0, %v1064
        %v1130 = vsub.f32 0.0, %v953
        %v1131 = vsub.f32 0.0, %v955
        %v1132 = vsub.f32 0.0, %v1066
        %v1133 = vsub.f32 0.0, %v1068
        %v1134 = vmul.f32 %v1070, 1.442695
        %v1135 = vpow.pop %v1134
        %v1136 = vmul.f32 %v1071, 1.442695
        %v1137 = vpow.pop %v1136
        %v1138 = vmul.f32 %v1072, 1.442695
        %v1139 = vpow.pop %v1138
        %v1140 = vmul.f32 %v1073, 1.442695
        %v1141 = vpow.pop %v1140
        %v1142 = vmul.f32 %v1074, 1.442695
        %v1143 = vpow.pop %v1142
        %v1144 = vmul.f32 %v1075, 1.442695
        %v1145 = vpow.pop %v1144
        %v1146 = vmul.f32 %v1076, 1.442695
        %v1147 = vpow.pop %v1146
        %v1148 = vmul.f32 %v1077, 1.442695
        %v1149 = vpow.pop %v1148
        %v1150 = vmul.f32 %v1078, 1.442695
        %v1151 = vpow.pop %v1150
        %v1152 = vmul.f32 %v1079, 1.442695
        %v1153 = vpow.pop %v1152
        %v1154 = vmul.f32 %v1080, 1.442695
        %v1155 = vpow.pop %v1154
        %v1156 = vmul.f32 %v1081, 1.442695
        %v1157 = vpow.pop %v1156
        %v1158 = vmul.f32 %v1082, 1.442695
        %v1159 = vpow.pop %v1158
        %v1160 = vmul.f32 %v1083, 1.442695
        %v1161 = vpow.pop %v1160
        %v1162 = vmul.f32 %v1084, 1.442695
        %v1163 = vpow.pop %v1162
        %v1164 = vmul.f32 %v1085, 1.442695
        %v1165 = vpow.pop %v1164
        %v1166 = vmul.f32 %v1086, 1.442695
        %v1167 = vpow.pop %v1166
        %v1168 = vmul.f32 %v1087, 1.442695
        %v1169 = vpow.pop %v1168
        %v1170 = vmul.f32 %v1088, 1.442695
        %v1171 = vpow.pop %v1170
        %v1172 = vmul.f32 %v1089, 1.442695
        %v1173 = vpow.pop %v1172
        %v1174 = vmul.f32 %v1090, 1.442695
        %v1175 = vpow.pop %v1174
        %v1176 = vmul.f32 %v1091, 1.442695
        %v1177 = vpow.pop %v1176
        %v1178 = vmul.f32 %v1092, 1.442695
        %v1179 = vpow.pop %v1178
        %v1180 = vmul.f32 %v1093, 1.442695
        %v1181 = vpow.pop %v1180
        %v1182 = vmul.f32 %v1094, 1.442695
        %v1183 = vpow.pop %v1182
        %v1184 = vmul.f32 %v1095, 1.442695
        %v1185 = vpow.pop %v1184
        %v1186 = vmul.f32 %v1096, 1.442695
        %v1187 = vpow.pop %v1186
        %v1188 = vmul.f32 %v1097, 1.442695
        %v1189 = vpow.pop %v1188
        %v1190 = vmul.f32 %v1098, 1.442695
        %v1191 = vpow.pop %v1190
        %v1192 = vmul.f32 %v1099, 1.442695
        %v1193 = vpow.pop %v1192
        %v1194 = vmul.f32 %v1100, 1.442695
        %v1195 = vpow.pop %v1194
        %v1196 = vmul.f32 %v1101, 1.442695
        %v1197 = vpow.pop %v1196
        %v1198 = vmul.f32 %v1102, 1.442695
        %v1199 = vpow.pop %v1198
        %v1200 = vmul.f32 %v1103, 1.442695
        %v1201 = vpow.pop %v1200
        %v1202 = vmul.f32 %v1104, 1.442695
        %v1203 = vpow.pop %v1202
        %v1204 = vmul.f32 %v1105, 1.442695
        %v1205 = vpow.pop %v1204
        %v1206 = vmul.f32 %v1106, 1.442695
        %v1207 = vpow.pop %v1206
        %v1208 = vmul.f32 %v1107, 1.442695
        %v1209 = vpow.pop %v1208
        %v1210 = vmul.f32 %v1108, 1.442695
        %v1211 = vpow.pop %v1210
        %v1212 = vmul.f32 %v1109, 1.442695
        %v1213 = vpow.pop %v1212
        %v1214 = vmul.f32 %v1110, 1.442695
        %v1215 = vpow.pop %v1214
        %v1216 = vmul.f32 %v1111, 1.442695
        %v1217 = vpow.pop %v1216
        %v1218 = vmul.f32 %v1112, 1.442695
        %v1219 = vpow.pop %v1218
        %v1220 = vmul.f32 %v1113, 1.442695
        %v1221 = vpow.pop %v1220
        %v1222 = vmul.f32 %v1114, 1.442695
        %v1223 = vpow.pop %v1222
        %v1224 = vmul.f32 %v1115, 1.442695
        %v1225 = vpow.pop %v1224
        %v1226 = vmul.f32 %v1116, 1.442695
        %v1227 = vpow.pop %v1226
        %v1228 = vmul.f32 %v1117, 1.442695
        %v1229 = vpow.pop %v1228
        %v1230 = vmul.f32 %v1118, 1.442695
        %v1231 = vpow.pop %v1230
        %v1232 = vmul.f32 %v1119, 1.442695
        %v1233 = vpow.pop %v1232
        %v1234 = vmul.f32 %v1120, 1.442695
        %v1235 = vpow.pop %v1234
        %v1236 = vmul.f32 %v1121, 1.442695
        %v1237 = vpow.pop %v1236
        %v1238 = vmul.f32 %v1122, 1.442695
        %v1239 = vpow.pop %v1238
        %v1240 = vmul.f32 %v1123, 1.442695
        %v1241 = vpow.pop %v1240
        %v1242 = vmul.f32 %v1124, 1.442695
        %v1243 = vpow.pop %v1242
        %v1244 = vmul.f32 %v1125, 1.442695
        %v1245 = vpow.pop %v1244
        %v1246 = vmul.f32 %v1126, 1.442695
        %v1247 = vpow.pop %v1246
        %v1248 = vmul.f32 %v1127, 1.442695
        %v1249 = vpow.pop %v1248
        %v1250 = vmul.f32 %v1128, 1.442695
        %v1251 = vpow.pop %v1250
        %v1252 = vmul.f32 %v1129, 1.442695
        %v1253 = vpow.pop %v1252
        %v1254 = vmul.f32 %v1130, 1.442695
        %v1255 = vpow.pop %v1254
        %v1256 = vmul.f32 %v1131, 1.442695
        %v1257 = vpow.pop %v1256
        %v1258 = vmul.f32 %v1132, 1.442695
        %v1259 = vpow.pop %v1258
        %v1260 = vmul.f32 %v1133, 1.442695
        %v1261 = vpow.pop %v1260
        %v1262 = vadd.f32 %v1135, 1.0
        %v1263 = vadd.f32 %v1137, 1.0
        %v1264 = vadd.f32 %v1139, 1.0
        %v1265 = vadd.f32 %v1141, 1.0
        %v1266 = vadd.f32 %v1143, 1.0
        %v1267 = vadd.f32 %v1145, 1.0
        %v1268 = vadd.f32 %v1147, 1.0
        %v1269 = vadd.f32 %v1149, 1.0
        %v1270 = vadd.f32 %v1151, 1.0
        %v1271 = vadd.f32 %v1153, 1.0
        %v1272 = vadd.f32 %v1155, 1.0
        %v1273 = vadd.f32 %v1157, 1.0
        %v1274 = vadd.f32 %v1159, 1.0
        %v1275 = vadd.f32 %v1161, 1.0
        %v1276 = vadd.f32 %v1163, 1.0
        %v1277 = vadd.f32 %v1165, 1.0
        %v1278 = vadd.f32 %v1167, 1.0
        %v1279 = vadd.f32 %v1169, 1.0
        %v1280 = vadd.f32 %v1171, 1.0
        %v1281 = vadd.f32 %v1173, 1.0
        %v1282 = vadd.f32 %v1175, 1.0
        %v1283 = vadd.f32 %v1177, 1.0
        %v1284 = vadd.f32 %v1179, 1.0
        %v1285 = vadd.f32 %v1181, 1.0
        %v1286 = vadd.f32 %v1183, 1.0
        %v1287 = vadd.f32 %v1185, 1.0
        %v1288 = vadd.f32 %v1187, 1.0
        %v1289 = vadd.f32 %v1189, 1.0
        %v1290 = vadd.f32 %v1191, 1.0
        %v1291 = vadd.f32 %v1193, 1.0
        %v1292 = vadd.f32 %v1195, 1.0
        %v1293 = vadd.f32 %v1197, 1.0
        %v1294 = vadd.f32 %v1199, 1.0
        %v1295 = vadd.f32 %v1201, 1.0
        %v1296 = vadd.f32 %v1203, 1.0
        %v1297 = vadd.f32 %v1205, 1.0
        %v1298 = vadd.f32 %v1207, 1.0
        %v1299 = vadd.f32 %v1209, 1.0
        %v1300 = vadd.f32 %v1211, 1.0
        %v1301 = vadd.f32 %v1213, 1.0
        %v1302 = vadd.f32 %v1215, 1.0
        %v1303 = vadd.f32 %v1217, 1.0
        %v1304 = vadd.f32 %v1219, 1.0
        %v1305 = vadd.f32 %v1221, 1.0
        %v1306 = vadd.f32 %v1223, 1.0
        %v1307 = vadd.f32 %v1225, 1.0
        %v1308 = vadd.f32 %v1227, 1.0
        %v1309 = vadd.f32 %v1229, 1.0
        %v1310 = vadd.f32 %v1231, 1.0
        %v1311 = vadd.f32 %v1233, 1.0
        %v1312 = vadd.f32 %v1235, 1.0
        %v1313 = vadd.f32 %v1237, 1.0
        %v1314 = vadd.f32 %v1239, 1.0
        %v1315 = vadd.f32 %v1241, 1.0
        %v1316 = vadd.f32 %v1243, 1.0
        %v1317 = vadd.f32 %v1245, 1.0
        %v1318 = vadd.f32 %v1247, 1.0
        %v1319 = vadd.f32 %v1249, 1.0
        %v1320 = vadd.f32 %v1251, 1.0
        %v1321 = vadd.f32 %v1253, 1.0
        %v1322 = vadd.f32 %v1255, 1.0
        %v1323 = vadd.f32 %v1257, 1.0
        %v1324 = vadd.f32 %v1259, 1.0
        %v1325 = vadd.f32 %v1261, 1.0
        %v1326 = vrcp.pop %v1262
        %v1327 = vmul.f32 1.0, %v1326
        %v1328 = vrcp.pop %v1263
        %v1329 = vmul.f32 1.0, %v1328
        %v1330 = vrcp.pop %v1264
        %v1331 = vmul.f32 1.0, %v1330
        %v1332 = vrcp.pop %v1265
        %v1333 = vmul.f32 1.0, %v1332
        %v1334 = vrcp.pop %v1266
        %v1335 = vmul.f32 1.0, %v1334
        %v1336 = vrcp.pop %v1267
        %v1337 = vmul.f32 1.0, %v1336
        %v1338 = vrcp.pop %v1268
        %v1339 = vmul.f32 1.0, %v1338
        %v1340 = vrcp.pop %v1269
        %v1341 = vmul.f32 1.0, %v1340
        %v1342 = vrcp.pop %v1270
        %v1343 = vmul.f32 1.0, %v1342
        %v1344 = vrcp.pop %v1271
        %v1345 = vmul.f32 1.0, %v1344
        %v1346 = vrcp.pop %v1272
        %v1347 = vmul.f32 1.0, %v1346
        %v1348 = vrcp.pop %v1273
        %v1349 = vmul.f32 1.0, %v1348
        %v1350 = vrcp.pop %v1274
        %v1351 = vmul.f32 1.0, %v1350
        %v1352 = vrcp.pop %v1275
        %v1353 = vmul.f32 1.0, %v1352
        %v1354 = vrcp.pop %v1276
        %v1355 = vmul.f32 1.0, %v1354
        %v1356 = vrcp.pop %v1277
        %v1357 = vmul.f32 1.0, %v1356
        %v1358 = vrcp.pop %v1278
        %v1359 = vmul.f32 1.0, %v1358
        %v1360 = vrcp.pop %v1279
        %v1361 = vmul.f32 1.0, %v1360
        %v1362 = vrcp.pop %v1280
        %v1363 = vmul.f32 1.0, %v1362
        %v1364 = vrcp.pop %v1281
        %v1365 = vmul.f32 1.0, %v1364
        %v1366 = vrcp.pop %v1282
        %v1367 = vmul.f32 1.0, %v1366
        %v1368 = vrcp.pop %v1283
        %v1369 = vmul.f32 1.0, %v1368
        %v1370 = vrcp.pop %v1284
        %v1371 = vmul.f32 1.0, %v1370
        %v1372 = vrcp.pop %v1285
        %v1373 = vmul.f32 1.0, %v1372
        %v1374 = vrcp.pop %v1286
        %v1375 = vmul.f32 1.0, %v1374
        %v1376 = vrcp.pop %v1287
        %v1377 = vmul.f32 1.0, %v1376
        %v1378 = vrcp.pop %v1288
        %v1379 = vmul.f32 1.0, %v1378
        %v1380 = vrcp.pop %v1289
        %v1381 = vmul.f32 1.0, %v1380
        %v1382 = vrcp.pop %v1290
        %v1383 = vmul.f32 1.0, %v1382
        %v1384 = vrcp.pop %v1291
        %v1385 = vmul.f32 1.0, %v1384
        %v1386 = vrcp.pop %v1292
        %v1387 = vmul.f32 1.0, %v1386
        %v1388 = vrcp.pop %v1293
        %v1389 = vmul.f32 1.0, %v1388
        %v1390 = vrcp.pop %v1294
        %v1391 = vmul.f32 1.0, %v1390
        %v1392 = vrcp.pop %v1295
        %v1393 = vmul.f32 1.0, %v1392
        %v1394 = vrcp.pop %v1296
        %v1395 = vmul.f32 1.0, %v1394
        %v1396 = vrcp.pop %v1297
        %v1397 = vmul.f32 1.0, %v1396
        %v1398 = vrcp.pop %v1298
        %v1399 = vmul.f32 1.0, %v1398
        %v1400 = vrcp.pop %v1299
        %v1401 = vmul.f32 1.0, %v1400
        %v1402 = vrcp.pop %v1300
        %v1403 = vmul.f32 1.0, %v1402
        %v1404 = vrcp.pop %v1301
        %v1405 = vmul.f32 1.0, %v1404
        %v1406 = vrcp.pop %v1302
        %v1407 = vmul.f32 1.0, %v1406
        %v1408 = vrcp.pop %v1303
        %v1409 = vmul.f32 1.0, %v1408
        %v1410 = vrcp.pop %v1304
        %v1411 = vmul.f32 1.0, %v1410
        %v1412 = vrcp.pop %v1305
        %v1413 = vmul.f32 1.0, %v1412
        %v1414 = vrcp.pop %v1306
        %v1415 = vmul.f32 1.0, %v1414
        %v1416 = vrcp.pop %v1307
        %v1417 = vmul.f32 1.0, %v1416
        %v1418 = vrcp.pop %v1308
        %v1419 = vmul.f32 1.0, %v1418
        %v1420 = vrcp.pop %v1309
        %v1421 = vmul.f32 1.0, %v1420
        %v1422 = vrcp.pop %v1310
        %v1423 = vmul.f32 1.0, %v1422
        %v1424 = vrcp.pop %v1311
        %v1425 = vmul.f32 1.0, %v1424
        %v1426 = vrcp.pop %v1312
        %v1427 = vmul.f32 1.0, %v1426
        %v1428 = vrcp.pop %v1313
        %v1429 = vmul.f32 1.0, %v1428
        %v1430 = vrcp.pop %v1314
        %v1431 = vmul.f32 1.0, %v1430
        %v1432 = vrcp.pop %v1315
        %v1433 = vmul.f32 1.0, %v1432
        %v1434 = vrcp.pop %v1316
        %v1435 = vmul.f32 1.0, %v1434
        %v1436 = vrcp.pop %v1317
        %v1437 = vmul.f32 1.0, %v1436
        %v1438 = vrcp.pop %v1318
        %v1439 = vmul.f32 1.0, %v1438
        %v1440 = vrcp.pop %v1319
        %v1441 = vmul.f32 1.0, %v1440
        %v1442 = vrcp.pop %v1320
        %v1443 = vmul.f32 1.0, %v1442
        %v1444 = vrcp.pop %v1321
        %v1445 = vmul.f32 1.0, %v1444
        %v1446 = vrcp.pop %v1322
        %v1447 = vmul.f32 1.0, %v1446
        %v1448 = vrcp.pop %v1323
        %v1449 = vmul.f32 1.0, %v1448
        %v1450 = vrcp.pop %v1324
        %v1451 = vmul.f32 1.0, %v1450
        %v1452 = vrcp.pop %v1325
        %v1453 = vmul.f32 1.0, %v1452
        %v1454 = vmul.f32 %v879, %v1327
        %v1455 = vmul.f32 %v881, %v1329
        %v1456 = vmul.f32 %v992, %v1331
        %v1457 = vmul.f32 %v994, %v1333
        %v1458 = vmul.f32 %v883, %v1335
        %v1459 = vmul.f32 %v885, %v1337
        %v1460 = vmul.f32 %v996, %v1339
        %v1461 = vmul.f32 %v998, %v1341
        %v1462 = vmul.f32 %v889, %v1343
        %v1463 = vmul.f32 %v891, %v1345
        %v1464 = vmul.f32 %v1002, %v1347
        %v1465 = vmul.f32 %v1004, %v1349
        %v1466 = vmul.f32 %v893, %v1351
        %v1467 = vmul.f32 %v895, %v1353
        %v1468 = vmul.f32 %v1006, %v1355
        %v1469 = vmul.f32 %v1008, %v1357
        %v1470 = vmul.f32 %v899, %v1359
        %v1471 = vmul.f32 %v901, %v1361
        %v1472 = vmul.f32 %v1012, %v1363
        %v1473 = vmul.f32 %v1014, %v1365
        %v1474 = vmul.f32 %v903, %v1367
        %v1475 = vmul.f32 %v905, %v1369
        %v1476 = vmul.f32 %v1016, %v1371
        %v1477 = vmul.f32 %v1018, %v1373
        %v1478 = vmul.f32 %v909, %v1375
        %v1479 = vmul.f32 %v911, %v1377
        %v1480 = vmul.f32 %v1022, %v1379
        %v1481 = vmul.f32 %v1024, %v1381
        %v1482 = vmul.f32 %v913, %v1383
        %v1483 = vmul.f32 %v915, %v1385
        %v1484 = vmul.f32 %v1026, %v1387
        %v1485 = vmul.f32 %v1028, %v1389
        %v1486 = vmul.f32 %v919, %v1391
        %v1487 = vmul.f32 %v921, %v1393
        %v1488 = vmul.f32 %v1032, %v1395
        %v1489 = vmul.f32 %v1034, %v1397
        %v1490 = vmul.f32 %v923, %v1399
        %v1491 = vmul.f32 %v925, %v1401
        %v1492 = vmul.f32 %v1036, %v1403
        %v1493 = vmul.f32 %v1038, %v1405
        %v1494 = vmul.f32 %v929, %v1407
        %v1495 = vmul.f32 %v931, %v1409
        %v1496 = vmul.f32 %v1042, %v1411
        %v1497 = vmul.f32 %v1044, %v1413
        %v1498 = vmul.f32 %v933, %v1415
        %v1499 = vmul.f32 %v935, %v1417
        %v1500 = vmul.f32 %v1046, %v1419
        %v1501 = vmul.f32 %v1048, %v1421
        %v1502 = vmul.f32 %v939, %v1423
        %v1503 = vmul.f32 %v941, %v1425
        %v1504 = vmul.f32 %v1052, %v1427
        %v1505 = vmul.f32 %v1054, %v1429
        %v1506 = vmul.f32 %v943, %v1431
        %v1507 = vmul.f32 %v945, %v1433
        %v1508 = vmul.f32 %v1056, %v1435
        %v1509 = vmul.f32 %v1058, %v1437
        %v1510 = vmul.f32 %v949, %v1439
        %v1511 = vmul.f32 %v951, %v1441
        %v1512 = vmul.f32 %v1062, %v1443
        %v1513 = vmul.f32 %v1064, %v1445
        %v1514 = vmul.f32 %v953, %v1447
        %v1515 = vmul.f32 %v955, %v1449
        %v1516 = vmul.f32 %v1066, %v1451
        %v1517 = vmul.f32 %v1068, %v1453
        %v1518 = vpack.c.bf16 %v1458, %v1454
        %v1519 = vpack.c.bf16 %v1459, %v1455
        %v1520 = vpack.c.bf16 %v1460, %v1456
        %v1521 = vpack.c.bf16 %v1461, %v1457
        %v1522 = vpack.c.bf16 %v1466, %v1462
        %v1523 = vpack.c.bf16 %v1467, %v1463
        %v1524 = vpack.c.bf16 %v1468, %v1464
        %v1525 = vpack.c.bf16 %v1469, %v1465
        %v1526 = vpack.c.bf16 %v1474, %v1470
        %v1527 = vpack.c.bf16 %v1475, %v1471
        %v1528 = vpack.c.bf16 %v1476, %v1472
        %v1529 = vpack.c.bf16 %v1477, %v1473
        %v1530 = vpack.c.bf16 %v1482, %v1478
        %v1531 = vpack.c.bf16 %v1483, %v1479
        %v1532 = vpack.c.bf16 %v1484, %v1480
        %v1533 = vpack.c.bf16 %v1485, %v1481
        %v1534 = vpack.c.bf16 %v1490, %v1486
        %v1535 = vpack.c.bf16 %v1491, %v1487
        %v1536 = vpack.c.bf16 %v1492, %v1488
        %v1537 = vpack.c.bf16 %v1493, %v1489
        %v1538 = vpack.c.bf16 %v1498, %v1494
        %v1539 = vpack.c.bf16 %v1499, %v1495
        %v1540 = vpack.c.bf16 %v1500, %v1496
        %v1541 = vpack.c.bf16 %v1501, %v1497
        %v1542 = vpack.c.bf16 %v1506, %v1502
        %v1543 = vpack.c.bf16 %v1507, %v1503
        %v1544 = vpack.c.bf16 %v1508, %v1504
        %v1545 = vpack.c.bf16 %v1509, %v1505
        %v1546 = vpack.c.bf16 %v1514, %v1510
        %v1547 = vpack.c.bf16 %v1515, %v1511
        %v1548 = vpack.c.bf16 %v1516, %v1512
        %v1549 = vpack.c.bf16 %v1517, %v1513
        %v1550 = vld [vmem:[#allocation7] sm:$0xf]
        %v1551 = vld [vmem:[#allocation7 + $0x4] sm:$0xf]
        %v1552 = vld [vmem:[#allocation7 + $0x8] sm:$0xf]
        %v1553 = vld [vmem:[#allocation7 + $0xc] sm:$0xf]
        %v1554 = vld [vmem:[#allocation7 + $0x10] sm:$0xf]
        %v1555 = vld [vmem:[#allocation7 + $0x14] sm:$0xf]
        %v1556 = vld [vmem:[#allocation7 + $0x18] sm:$0xf]
        %v1557 = vld [vmem:[#allocation7 + $0x1c] sm:$0xf]
        %v1558 = vld [vmem:[#allocation7 + $0x20] sm:$0xf]
        %v1559 = vld [vmem:[#allocation7 + $0x24] sm:$0xf]
        %v1560 = vld [vmem:[#allocation7 + $0x28] sm:$0xf]
        %v1561 = vld [vmem:[#allocation7 + $0x2c] sm:$0xf]
        %v1562 = vld [vmem:[#allocation7 + $0x30] sm:$0xf]
        %v1563 = vld [vmem:[#allocation7 + $0x34] sm:$0xf]
        %v1564 = vld [vmem:[#allocation7 + $0x38] sm:$0xf]
        %v1565 = vld [vmem:[#allocation7 + $0x3c] sm:$0xf]
        %v1566 = vld [vmem:[#allocation7 + $0x40] sm:$0xf]
        %v1567 = vld [vmem:[#allocation7 + $0x44] sm:$0xf]
        %v1568 = vld [vmem:[#allocation7 + $0x48] sm:$0xf]
        %v1569 = vld [vmem:[#allocation7 + $0x4c] sm:$0xf]
        %v1570 = vld [vmem:[#allocation7 + $0x50] sm:$0xf]
        %v1571 = vld [vmem:[#allocation7 + $0x54] sm:$0xf]
        %v1572 = vld [vmem:[#allocation7 + $0x58] sm:$0xf]
        %v1573 = vld [vmem:[#allocation7 + $0x5c] sm:$0xf]
        %v1574 = vld [vmem:[#allocation7 + $0x60] sm:$0xf]
        %v1575 = vld [vmem:[#allocation7 + $0x64] sm:$0xf]
        %v1576 = vld [vmem:[#allocation7 + $0x68] sm:$0xf]
        %v1577 = vld [vmem:[#allocation7 + $0x6c] sm:$0xf]
        %v1578 = vld [vmem:[#allocation7 + $0x70] sm:$0xf]
        %v1579 = vld [vmem:[#allocation7 + $0x74] sm:$0xf]
        %v1580 = vld [vmem:[#allocation7 + $0x78] sm:$0xf]
        %v1581 = vld [vmem:[#allocation7 + $0x7c] sm:$0xf]
        %v1582 = vld [vmem:[#allocation7 + $0x80] sm:$0xf]
        %v1583 = vld [vmem:[#allocation7 + $0x84] sm:$0xf]
        %v1584 = vld [vmem:[#allocation7 + $0x88] sm:$0xf]
        %v1585 = vld [vmem:[#allocation7 + $0x8c] sm:$0xf]
        %v1586 = vld [vmem:[#allocation7 + $0x90] sm:$0xf]
        %v1587 = vld [vmem:[#allocation7 + $0x94] sm:$0xf]
        %v1588 = vld [vmem:[#allocation7 + $0x98] sm:$0xf]
        %v1589 = vld [vmem:[#allocation7 + $0x9c] sm:$0xf]
        %v1590 = vld [vmem:[#allocation7 + $0xa0] sm:$0xf]
        %v1591 = vld [vmem:[#allocation7 + $0xa4] sm:$0xf]
        %v1592 = vld [vmem:[#allocation7 + $0xa8] sm:$0xf]
        %v1593 = vld [vmem:[#allocation7 + $0xac] sm:$0xf]
        %v1594 = vld [vmem:[#allocation7 + $0xb0] sm:$0xf]
        %v1595 = vld [vmem:[#allocation7 + $0xb4] sm:$0xf]
        %v1596 = vld [vmem:[#allocation7 + $0xb8] sm:$0xf]
        %v1597 = vld [vmem:[#allocation7 + $0xbc] sm:$0xf]
        %v1598 = vld [vmem:[#allocation7 + $0xc0] sm:$0xf]
        %v1599 = vld [vmem:[#allocation7 + $0xc4] sm:$0xf]
        %v1600 = vld [vmem:[#allocation7 + $0xc8] sm:$0xf]
        %v1601 = vld [vmem:[#allocation7 + $0xcc] sm:$0xf]
        %v1602 = vld [vmem:[#allocation7 + $0xd0] sm:$0xf]
        %v1603 = vld [vmem:[#allocation7 + $0xd4] sm:$0xf]
        %v1604 = vld [vmem:[#allocation7 + $0xd8] sm:$0xf]
        %v1605 = vld [vmem:[#allocation7 + $0xdc] sm:$0xf]
        %v1606 = vld [vmem:[#allocation7 + $0xe0] sm:$0xf]
        %v1607 = vld [vmem:[#allocation7 + $0xe4] sm:$0xf]
        %v1608 = vld [vmem:[#allocation7 + $0xe8] sm:$0xf]
        %v1609 = vld [vmem:[#allocation7 + $0xec] sm:$0xf]
        %v1610 = vld [vmem:[#allocation7 + $0xf0] sm:$0xf]
        %v1611 = vld [vmem:[#allocation7 + $0xf4] sm:$0xf]
        %v1612 = vld [vmem:[#allocation7 + $0xf8] sm:$0xf]
        %v1613 = vld [vmem:[#allocation7 + $0xfc] sm:$0xf]
        %v1614 = vld [vmem:[%s6] sm:$0x1]
        %v1616 = vlaneseq
        %v1617 = vshrl.u32 %v1616, 7
        %v1618 = vsub.s32 0, %v1617
        %v1619 = vrot.slane %v1614, %v1618
        %v1685 = vunpack.c.l.b16 %v1550
        %v1686 = vunpack.c.l.b16 %v1551
        %v1687 = vunpack.c.l.b16 %v1552
        %v1688 = vunpack.c.l.b16 %v1553
        %v1689 = vunpack.c.l.b16 %v1554
        %v1690 = vunpack.c.l.b16 %v1555
        %v1691 = vunpack.c.l.b16 %v1556
        %v1692 = vunpack.c.l.b16 %v1557
        %v1693 = vunpack.c.l.b16 %v1558
        %v1694 = vunpack.c.l.b16 %v1559
        %v1695 = vunpack.c.l.b16 %v1560
        %v1696 = vunpack.c.l.b16 %v1561
        %v1697 = vunpack.c.l.b16 %v1562
        %v1698 = vunpack.c.l.b16 %v1563
        %v1699 = vunpack.c.l.b16 %v1564
        %v1700 = vunpack.c.l.b16 %v1565
        %v1701 = vunpack.c.l.b16 %v1566
        %v1702 = vunpack.c.l.b16 %v1567
        %v1703 = vunpack.c.l.b16 %v1568
        %v1704 = vunpack.c.l.b16 %v1569
        %v1705 = vunpack.c.l.b16 %v1570
        %v1706 = vunpack.c.l.b16 %v1571
        %v1707 = vunpack.c.l.b16 %v1572
        %v1708 = vunpack.c.l.b16 %v1573
        %v1709 = vunpack.c.l.b16 %v1574
        %v1710 = vunpack.c.l.b16 %v1575
        %v1711 = vunpack.c.l.b16 %v1576
        %v1712 = vunpack.c.l.b16 %v1577
        %v1713 = vunpack.c.l.b16 %v1578
        %v1714 = vunpack.c.l.b16 %v1579
        %v1715 = vunpack.c.l.b16 %v1580
        %v1716 = vunpack.c.l.b16 %v1581
        %v1717 = vunpack.c.l.b16 %v1582
        %v1718 = vunpack.c.l.b16 %v1583
        %v1719 = vunpack.c.l.b16 %v1584
        %v1720 = vunpack.c.l.b16 %v1585
        %v1721 = vunpack.c.l.b16 %v1586
        %v1722 = vunpack.c.l.b16 %v1587
        %v1723 = vunpack.c.l.b16 %v1588
        %v1724 = vunpack.c.l.b16 %v1589
        %v1725 = vunpack.c.l.b16 %v1590
        %v1726 = vunpack.c.l.b16 %v1591
        %v1727 = vunpack.c.l.b16 %v1592
        %v1728 = vunpack.c.l.b16 %v1593
        %v1729 = vunpack.c.l.b16 %v1594
        %v1730 = vunpack.c.l.b16 %v1595
        %v1731 = vunpack.c.l.b16 %v1596
        %v1732 = vunpack.c.l.b16 %v1597
        %v1733 = vunpack.c.l.b16 %v1598
        %v1734 = vunpack.c.l.b16 %v1599
        %v1735 = vunpack.c.l.b16 %v1600
        %v1736 = vunpack.c.l.b16 %v1601
        %v1737 = vunpack.c.l.b16 %v1602
        %v1738 = vunpack.c.l.b16 %v1603
        %v1739 = vunpack.c.l.b16 %v1604
        %v1740 = vunpack.c.l.b16 %v1605
        %v1741 = vunpack.c.l.b16 %v1606
        %v1742 = vunpack.c.l.b16 %v1607
        %v1743 = vunpack.c.l.b16 %v1608
        %v1744 = vunpack.c.l.b16 %v1609
        %v1745 = vunpack.c.l.b16 %v1610
        %v1746 = vunpack.c.l.b16 %v1611
        %v1747 = vunpack.c.l.b16 %v1612
        %v1748 = vunpack.c.l.b16 %v1613
        %v1749 = vpack.c.b16 %v1686, %v1685
        %v1750 = vpack.c.b16 %v1688, %v1687
        %v1751 = vpack.c.b16 %v1690, %v1689
        %v1752 = vpack.c.b16 %v1692, %v1691
        %v1753 = vpack.c.b16 %v1694, %v1693
        %v1754 = vpack.c.b16 %v1696, %v1695
        %v1755 = vpack.c.b16 %v1698, %v1697
        %v1756 = vpack.c.b16 %v1700, %v1699
        %v1757 = vpack.c.b16 %v1702, %v1701
        %v1758 = vpack.c.b16 %v1704, %v1703
        %v1759 = vpack.c.b16 %v1706, %v1705
        %v1760 = vpack.c.b16 %v1708, %v1707
        %v1761 = vpack.c.b16 %v1710, %v1709
        %v1762 = vpack.c.b16 %v1712, %v1711
        %v1763 = vpack.c.b16 %v1714, %v1713
        %v1764 = vpack.c.b16 %v1716, %v1715
        %v1765 = vpack.c.b16 %v1718, %v1717
        %v1766 = vpack.c.b16 %v1720, %v1719
        %v1767 = vpack.c.b16 %v1722, %v1721
        %v1768 = vpack.c.b16 %v1724, %v1723
        %v1769 = vpack.c.b16 %v1726, %v1725
        %v1770 = vpack.c.b16 %v1728, %v1727
        %v1771 = vpack.c.b16 %v1730, %v1729
        %v1772 = vpack.c.b16 %v1732, %v1731
        %v1773 = vpack.c.b16 %v1734, %v1733
        %v1774 = vpack.c.b16 %v1736, %v1735
        %v1775 = vpack.c.b16 %v1738, %v1737
        %v1776 = vpack.c.b16 %v1740, %v1739
        %v1777 = vpack.c.b16 %v1742, %v1741
        %v1778 = vpack.c.b16 %v1744, %v1743
        %v1779 = vpack.c.b16 %v1746, %v1745
        %v1780 = vpack.c.b16 %v1748, %v1747
        %1813 = vmatprep.subr.bf16.mxu0 0
        %1814 = vmatpush1.bf16.msra.mxu0 %v1749
        %1815 = vmatprep.subr.bf16.mxu0 0
        %1816 = vmatpush1.bf16.msra.mxu0 %v1750
        %1817 = vmatprep.subr.bf16.mxu0 0
        %1818 = vmatpush1.bf16.msra.mxu0 %v1751
        %1819 = vmatprep.subr.bf16.mxu0 0
        %1820 = vmatpush1.bf16.msra.mxu0 %v1752
        %1821 = vmatprep.subr.bf16.mxu0 0
        %1822 = vmatpush1.bf16.msra.mxu0 %v1753
        %1823 = vmatprep.subr.bf16.mxu0 0
        %1824 = vmatpush1.bf16.msra.mxu0 %v1754
        %1825 = vmatprep.subr.bf16.mxu0 0
        %1826 = vmatpush1.bf16.msra.mxu0 %v1755
        %1827 = vmatprep.subr.bf16.mxu0 0
        %1828 = vmatpush1.bf16.msra.mxu0 %v1756
        %1829 = vmatprep.subr.bf16.mxu0 0
        %1830 = vmatpush1.bf16.msra.mxu0 %v1757
        %1831 = vmatprep.subr.bf16.mxu0 0
        %1832 = vmatpush1.bf16.msra.mxu0 %v1758
        %1833 = vmatprep.subr.bf16.mxu0 0
        %1834 = vmatpush1.bf16.msra.mxu0 %v1759
        %1835 = vmatprep.subr.bf16.mxu0 0
        %1836 = vmatpush1.bf16.msra.mxu0 %v1760
        %1837 = vmatprep.subr.bf16.mxu0 0
        %1838 = vmatpush1.bf16.msra.mxu0 %v1761
        %1839 = vmatprep.subr.bf16.mxu0 0
        %1840 = vmatpush1.bf16.msra.mxu0 %v1762
        %1841 = vmatprep.subr.bf16.mxu0 0
        %1842 = vmatpush1.bf16.msra.mxu0 %v1763
        %1843 = vmatprep.subr.bf16.mxu0 0
        %1844 = vmatpush1.bf16.msra.mxu0 %v1764
        %1845 = vmatprep.mubr.bf16.mxu0 %v1519
        %1846 = vmatmul.mubr.bf16.gmra.mrb[0].mxu0 %v1518
        %v1847 = vpop.f32.mrb[0].mxu0
        %v1848 = vadd.f32 %v1619, %v1847
        %v1849 = vpop.f32.mrb[0].mxu0
        %v1850 = vpop.f32.mrb[0].mxu0
        %v1851 = vadd.f32 %v1619, %v1850
        %v1852 = vpop.f32.mrb[0].mxu0
        %1853 = vmatprep.mubr.bf16.mxu0 %v1523
        %1854 = vmatmul.mubr.bf16.gmra.mrb[0].mxu0 %v1522
        %v1855 = vpop.f32.mrb[0].mxu0
        %v1856 = vadd.f32 %v1619, %v1855
        %v1857 = vpop.f32.mrb[0].mxu0
        %v1858 = vpop.f32.mrb[0].mxu0
        %v1859 = vadd.f32 %v1619, %v1858
        %v1860 = vpop.f32.mrb[0].mxu0
        %1861 = vmatprep.mubr.bf16.mxu0 %v1527
        %1862 = vmatmul.mubr.bf16.gmra.mrb[0].mxu0 %v1526
        %v1863 = vpop.f32.mrb[0].mxu0
        %v1864 = vadd.f32 %v1619, %v1863
        %v1865 = vpop.f32.mrb[0].mxu0
        %v1866 = vpop.f32.mrb[0].mxu0
        %v1867 = vadd.f32 %v1619, %v1866
        %v1868 = vpop.f32.mrb[0].mxu0
        %1869 = vmatprep.mubr.bf16.mxu0 %v1531
        %1870 = vmatmul.mubr.bf16.gmra.mrb[0].mxu0 %v1530
        %v1871 = vpop.f32.mrb[0].mxu0
        %v1872 = vadd.f32 %v1619, %v1871
        %v1873 = vpop.f32.mrb[0].mxu0
        %v1874 = vpop.f32.mrb[0].mxu0
        %v1875 = vadd.f32 %v1619, %v1874
        %v1876 = vpop.f32.mrb[0].mxu0
        %1877 = vmatprep.mubr.bf16.mxu0 %v1535
        %1878 = vmatmul.mubr.bf16.gmra.mrb[0].mxu0 %v1534
        %v1879 = vpop.f32.mrb[0].mxu0
        %v1880 = vadd.f32 %v1619, %v1879
        %v1881 = vpop.f32.mrb[0].mxu0
        %v1882 = vpop.f32.mrb[0].mxu0
        %v1883 = vadd.f32 %v1619, %v1882
        %v1884 = vpop.f32.mrb[0].mxu0
        %1885 = vmatprep.mubr.bf16.mxu0 %v1539
        %1886 = vmatmul.mubr.bf16.gmra.mrb[0].mxu0 %v1538
        %v1887 = vpop.f32.mrb[0].mxu0
        %v1888 = vadd.f32 %v1619, %v1887
        %v1889 = vpop.f32.mrb[0].mxu0
        %v1890 = vpop.f32.mrb[0].mxu0
        %v1891 = vadd.f32 %v1619, %v1890
        %v1892 = vpop.f32.mrb[0].mxu0
        %1893 = vmatprep.mubr.bf16.mxu0 %v1543
        %1894 = vmatmul.mubr.bf16.gmra.mrb[0].mxu0 %v1542
        %v1895 = vpop.f32.mrb[0].mxu0
        %v1896 = vadd.f32 %v1619, %v1895
        %v1897 = vpop.f32.mrb[0].mxu0
        %v1898 = vpop.f32.mrb[0].mxu0
        %v1899 = vadd.f32 %v1619, %v1898
        %v1900 = vpop.f32.mrb[0].mxu0
        %1901 = vmatprep.mubr.bf16.mxu0 %v1547
        %1902 = vmatmul.mubr.bf16.gmra.mrb[0].mxu0 %v1546
        %v1903 = vpop.f32.mrb[0].mxu0
        %v1904 = vadd.f32 %v1619, %v1903
        %v1905 = vpop.f32.mrb[0].mxu0
        %v1906 = vpop.f32.mrb[0].mxu0
        %v1907 = vadd.f32 %v1619, %v1906
        %v1908 = vpop.f32.mrb[0].mxu0
        %1909 = vdwg.mxu0
        %1910 = vmatprep.subr.bf16.mxu0 0
        %1911 = vmatpush1.bf16.msra.mxu0 %v1765
        %1912 = vmatprep.subr.bf16.mxu0 0
        %1913 = vmatpush1.bf16.msra.mxu0 %v1766
        %1914 = vmatprep.subr.bf16.mxu0 0
        %1915 = vmatpush1.bf16.msra.mxu0 %v1767
        %1916 = vmatprep.subr.bf16.mxu0 0
        %1917 = vmatpush1.bf16.msra.mxu0 %v1768
        %1918 = vmatprep.subr.bf16.mxu0 0
        %1919 = vmatpush1.bf16.msra.mxu0 %v1769
        %1920 = vmatprep.subr.bf16.mxu0 0
        %1921 = vmatpush1.bf16.msra.mxu0 %v1770
        %1922 = vmatprep.subr.bf16.mxu0 0
        %1923 = vmatpush1.bf16.msra.mxu0 %v1771
        %1924 = vmatprep.subr.bf16.mxu0 0
        %1925 = vmatpush1.bf16.msra.mxu0 %v1772
        %1926 = vmatprep.subr.bf16.mxu0 0
        %1927 = vmatpush1.bf16.msra.mxu0 %v1773
        %1928 = vmatprep.subr.bf16.mxu0 0
        %1929 = vmatpush1.bf16.msra.mxu0 %v1774
        %1930 = vmatprep.subr.bf16.mxu0 0
        %1931 = vmatpush1.bf16.msra.mxu0 %v1775
        %1932 = vmatprep.subr.bf16.mxu0 0
        %1933 = vmatpush1.bf16.msra.mxu0 %v1776
        %1934 = vmatprep.subr.bf16.mxu0 0
        %1935 = vmatpush1.bf16.msra.mxu0 %v1777
        %1936 = vmatprep.subr.bf16.mxu0 0
        %1937 = vmatpush1.bf16.msra.mxu0 %v1778
        %1938 = vmatprep.subr.bf16.mxu0 0
        %1939 = vmatpush1.bf16.msra.mxu0 %v1779
        %1940 = vmatprep.subr.bf16.mxu0 0
        %1941 = vmatpush1.bf16.msra.mxu0 %v1780
        %1942 = vmatprep.mubr.bf16.mxu0 %v1521
        %1943 = vmatmul.mubr.bf16.gmra.mrb[0].mxu0 %v1520
        %v1944 = vpop.f32.mrb[0].mxu0
        %v1945 = vadd.f32 %v1848, %v1944
        %v1946 = vpop.f32.mrb[0].mxu0
        %v1947 = vpop.f32.mrb[0].mxu0
        %v1948 = vadd.f32 %v1851, %v1947
        %v1949 = vpop.f32.mrb[0].mxu0
        %1950 = vmatprep.mubr.bf16.mxu0 %v1525
        %1951 = vmatmul.mubr.bf16.gmra.mrb[0].mxu0 %v1524
        %v1952 = vpop.f32.mrb[0].mxu0
        %v1953 = vadd.f32 %v1856, %v1952
        %v1954 = vpop.f32.mrb[0].mxu0
        %v1955 = vpop.f32.mrb[0].mxu0
        %v1956 = vadd.f32 %v1859, %v1955
        %v1957 = vpop.f32.mrb[0].mxu0
        %1958 = vmatprep.mubr.bf16.mxu0 %v1529
        %1959 = vmatmul.mubr.bf16.gmra.mrb[0].mxu0 %v1528
        %v1960 = vpop.f32.mrb[0].mxu0
        %v1961 = vadd.f32 %v1864, %v1960
        %v1962 = vpop.f32.mrb[0].mxu0
        %v1963 = vpop.f32.mrb[0].mxu0
        %v1964 = vadd.f32 %v1867, %v1963
        %v1965 = vpop.f32.mrb[0].mxu0
        %1966 = vmatprep.mubr.bf16.mxu0 %v1533
        %1967 = vmatmul.mubr.bf16.gmra.mrb[0].mxu0 %v1532
        %v1968 = vpop.f32.mrb[0].mxu0
        %v1969 = vadd.f32 %v1872, %v1968
        %v1970 = vpop.f32.mrb[0].mxu0
        %v1971 = vpop.f32.mrb[0].mxu0
        %v1972 = vadd.f32 %v1875, %v1971
        %v1973 = vpop.f32.mrb[0].mxu0
        %1974 = vmatprep.mubr.bf16.mxu0 %v1537
        %1975 = vmatmul.mubr.bf16.gmra.mrb[0].mxu0 %v1536
        %v1976 = vpop.f32.mrb[0].mxu0
        %v1977 = vadd.f32 %v1880, %v1976
        %v1978 = vpop.f32.mrb[0].mxu0
        %v1979 = vpop.f32.mrb[0].mxu0
        %v1980 = vadd.f32 %v1883, %v1979
        %v1981 = vpop.f32.mrb[0].mxu0
        %1982 = vmatprep.mubr.bf16.mxu0 %v1541
        %1983 = vmatmul.mubr.bf16.gmra.mrb[0].mxu0 %v1540
        %v1984 = vpop.f32.mrb[0].mxu0
        %v1985 = vadd.f32 %v1888, %v1984
        %v1986 = vpop.f32.mrb[0].mxu0
        %v1987 = vpop.f32.mrb[0].mxu0
        %v1988 = vadd.f32 %v1891, %v1987
        %v1989 = vpop.f32.mrb[0].mxu0
        %1990 = vmatprep.mubr.bf16.mxu0 %v1545
        %1991 = vmatmul.mubr.bf16.gmra.mrb[0].mxu0 %v1544
        %v1992 = vpop.f32.mrb[0].mxu0
        %v1993 = vadd.f32 %v1896, %v1992
        %v1994 = vpop.f32.mrb[0].mxu0
        %v1995 = vpop.f32.mrb[0].mxu0
        %v1996 = vadd.f32 %v1899, %v1995
        %v1997 = vpop.f32.mrb[0].mxu0
        %1998 = vmatprep.mubr.bf16.mxu0 %v1549
        %1999 = vmatmul.mubr.bf16.gmra.mrb[0].mxu0 %v1548
        %v2000 = vpop.f32.mrb[0].mxu0
        %v2001 = vadd.f32 %v1904, %v2000
        %v2002 = vpop.f32.mrb[0].mxu0
        %v2003 = vpop.f32.mrb[0].mxu0
        %v2004 = vadd.f32 %v1907, %v2003
        %v2005 = vpop.f32.mrb[0].mxu0
        %2006 = vdwg.mxu0
        %v2007 = vmul.f32 %v1945, 0.5
        %v2008 = vmul.f32 %v1948, 0.5
        %v2009 = vmul.f32 %v1953, 0.5
        %v2010 = vmul.f32 %v1956, 0.5
        %v2011 = vmul.f32 %v1961, 0.5
        %v2012 = vmul.f32 %v1964, 0.5
        %v2013 = vmul.f32 %v1969, 0.5
        %v2014 = vmul.f32 %v1972, 0.5
        %v2015 = vmul.f32 %v1977, 0.5
        %v2016 = vmul.f32 %v1980, 0.5
        %v2017 = vmul.f32 %v1985, 0.5
        %v2018 = vmul.f32 %v1988, 0.5
        %v2019 = vmul.f32 %v1993, 0.5
        %v2020 = vmul.f32 %v1996, 0.5
        %v2021 = vmul.f32 %v2001, 0.5
        %v2022 = vmul.f32 %v2004, 0.5
        %v2023 = vadd.f32 %v383, %v2007
        %v2024 = vadd.f32 %v384, %v2008
        %v2025 = vadd.f32 %v385, %v2009
        %v2026 = vadd.f32 %v386, %v2010
        %v2027 = vadd.f32 %v387, %v2011
        %v2028 = vadd.f32 %v388, %v2012
        %v2029 = vadd.f32 %v389, %v2013
        %v2030 = vadd.f32 %v390, %v2014
        %v2031 = vadd.f32 %v391, %v2015
        %v2032 = vadd.f32 %v392, %v2016
        %v2033 = vadd.f32 %v393, %v2017
        %v2034 = vadd.f32 %v394, %v2018
        %v2035 = vadd.f32 %v395, %v2019
        %v2036 = vadd.f32 %v396, %v2020
        %v2037 = vadd.f32 %v397, %v2021
        %v2038 = vadd.f32 %v398, %v2022
        %2039 = vst [vmem:[%s379] sm:$0xff] %v2023
        %2040 = vst [vmem:[%s379 + $0x8] sm:$0xff] %v2024
        %2041 = vst [vmem:[%s379 + $0x10] sm:$0xff] %v2025
        %2042 = vst [vmem:[%s379 + $0x18] sm:$0xff] %v2026
        %2043 = vst [vmem:[%s379 + $0x20] sm:$0xff] %v2027
        %2044 = vst [vmem:[%s379 + $0x28] sm:$0xff] %v2028
        %2045 = vst [vmem:[%s379 + $0x30] sm:$0xff] %v2029
        %2046 = vst [vmem:[%s379 + $0x38] sm:$0xff] %v2030
        %2047 = vst [vmem:[%s379 + $0x40] sm:$0xff] %v2031
        %2048 = vst [vmem:[%s379 + $0x48] sm:$0xff] %v2032
        %2049 = vst [vmem:[%s379 + $0x50] sm:$0xff] %v2033
        %2050 = vst [vmem:[%s379 + $0x58] sm:$0xff] %v2034
        %2051 = vst [vmem:[%s379 + $0x60] sm:$0xff] %v2035
        %2052 = vst [vmem:[%s379 + $0x68] sm:$0xff] %v2036
        %2053 = vst [vmem:[%s379 + $0x70] sm:$0xff] %v2037
        %2054 = vst [vmem:[%s379 + $0x78] sm:$0xff] %v2038
        %s2055 = sand.u32 %s229, 1
        %s2056 = scalar_lea.sflag [#allocation4], %s2055
        %s2057 = sand.u32 %s229, 1
        %s2058 = smul.addr %s2057, 128
        %s2059 = scalar_lea.vmem [#allocation8], %s2058
        // Predicated region
        $region69: #{tpu_custom_call.1} parent=55 // pred_check
          %p2060 = pneg %p239
        $region70: #{tpu_custom_call.1} parent=55 // pred_check_branch
          %2062 = sbr.rel (%p2060) target = $region72
        $region71: #{tpu_custom_call.1} parent=55 // pred_region
          %s2063 = smul.u32 16, %s27
          %s2065 = ssub.s32 2048, 2048
          %2066 = vsyncadd %s2056, %s2065
          %s2067 = smul.addr %s2063, 128
          %s2068 = scalar_lea.hbm %s9, %s2067
          %s2069 = sshll.u32 %s2059, 4
          %s2070 = int_to_ptr.vmem [resolvable:$true] %s2069
          %2075 = dma.vmem_to_hbm [thread:$0]  %s2070, 2048, %s2068, %s2056, 128, 128, 8
        $region72: #{tpu_custom_call.1} parent=55 // pred_fallthru
          _
      $region56: #{tpu_custom_call.1} parent=5 // pred_fallthru
        _
      %p2076 = scmp.le.s32.totalorder 2, %s22
      // Predicated region
      $region73: #{tpu_custom_call.1} parent=5 // pred_check
        %p2077 = pneg %p2076
      $region74: #{tpu_custom_call.1} parent=5 // pred_check_branch
        %2079 = sbr.rel (%p2077) target = $region76
      $region75: #{tpu_custom_call.1} parent=5 // pred_region
        %s2080 = ssub.s32 %s22, 2
        // Predicated region
        $region77: #{tpu_custom_call.1} parent=75 // pred_check
          %p2081 = pneg %p245
        $region78: #{tpu_custom_call.1} parent=75 // pred_check_branch
          %2083 = sbr.rel (%p2081) target = $region80
        $region79: #{tpu_custom_call.1} parent=75 // pred_region
          %s2084 = sand.u32 %s230, 1
          %s2085 = scalar_lea.sflag [#allocation4], %s2084
          %s2086 = sand.u32 %s230, 1
          %s2087 = smul.addr %s2086, 128
          %s2088 = scalar_lea.vmem [#allocation8], %s2087
          %2089 = dma.done %s2085, 2048
        $region80: #{tpu_custom_call.1} parent=75 // pred_fallthru
          _
      $region76: #{tpu_custom_call.1} parent=5 // pred_fallthru
        _
    $region6: #{tpu_custom_call.1} parent=1 // loop_footer
      %s26 = sadd.s32 1, %s22
    $region7: #{tpu_custom_call.1} parent=1 // loop_footer_branch
      %21 = sbr.rel target = $region3
    $region8: #{tpu_custom_call.1} parent=1 // loop_exit
      _
    %2090 = vsyncpa [#allocation3], 1
    %s2091 = scalar_lea.sflag [#allocation3], 1
    %2092 = vsyncpa %s2091, 1
    %2093 = vsyncpa [#allocation6], 1
    %2094 = vsyncpa [#allocation4], 1
    %s2095 = scalar_lea.sflag [#allocation4], 1
    %2096 = vsyncpa %s2095, 1

</llo_original>
